<compile_context>
chip_gen: v7x
topology: tpu7x:2x2x1
jax: 0.10.0
libtpu: 0.0.40
codegen_flags: <defaults>
</compile_context>

<pallas_src>
import functools

import jax
import jax.numpy as jnp
from jax import lax
from jax.experimental import pallas as pl
from jax.experimental.pallas import tpu as pltpu

PI = 3.1415926


# ----------------------------- Pallas kernels --------------------------------

def _gabor_pool_kernel(p_ref, w_ref, o_ref, *, lane_chunk):
    """Fused: merged (block-diag) Gabor conv -> 2x2 max-pool -> |.| -> ReLU.

    p_ref: (36, TILE_M) bf16  im2col patches; rows = 4 pool offsets x 9 taps
    w_ref: (128, 36)    bf16  block-diag LHS; per offset o rows
                              [32o : 32o+16) = re, [32o+16 : 32o+32) = im
    o_ref: (16, TILE_M) bf16  pooled activations (channels in sublanes)
    """
    w = w_ref[...]
    c = o_ref.shape[0]                       # 16 output channels
    tile = o_ref.shape[1]
    n_chunks = tile // lane_chunk

    def body(j, carry):
        col = pl.multiple_of(j * lane_chunk, lane_chunk)
        # One MXU push covers all 4 pool offsets (128-row LHS).
        y = jnp.dot(w, p_ref[:, pl.ds(col, lane_chunk)],
                    preferred_element_type=jnp.float32)        # (128, chunk)
        best = None
        for o in range(4):                                     # pool offsets
            base = 2 * c * o
            re = y[base:base + c, :]
            im = y[base + c:base + 2 * c, :]
            s = re * re + im * im
            best = s if best is None else jnp.maximum(best, s)
        # sqrt hoisted out of the pool loop (monotone => identical result):
        # one EUP sqrt per output element instead of 4.  Dropout == identity.
        mag = jnp.sqrt(best + 1e-4) - 0.01
        o_ref[:, pl.ds(col, lane_chunk)] = (
            jnp.maximum(mag, 0.0).astype(o_ref.dtype))
        return carry

    lax.fori_loop(0, n_chunks, body, 0)


def _conv_pool_kernel(p_ref, w_ref, o_ref):
    """Fused: conv (bias folded into LHS) -> 2x2 max-pool -> ReLU.

    p_ref: (4, K+1, TILE_M) bf16  patches per pool offset, last row = ones
    w_ref: (C, K+1)         bf16  conv LHS, last column = bias
    o_ref: (C, TILE_M)      f32
    """
    w = w_ref[...]
    best = None
    for k in range(4):                       # static unroll over 4 offsets
        y = jnp.dot(w, p_ref[k], preferred_element_type=jnp.float32)
        best = y if best is None else jnp.maximum(best, y)
    # Dropout == identity; bias already inside y; ReLU after the pool max.
    o_ref[...] = jnp.maximum(best, 0.0)


# ----------------------------- Pallas wrappers --------------------------------

def _round_up(x, m):
    return (x + m - 1) // m * m


def _cdiv(a, b):
    return -(-a // b)


def _choose_tile(m, tile_max, min_grid=2):
    """Lane tile: multiple of 128, <= tile_max, and (when there is enough
    work) small enough that the grid keeps >= min_grid steps so both v7x
    TensorCores are fed."""
    assert tile_max % 128 == 0 and tile_max >= 128
    mp128 = _round_up(m, 128)
    t = min(tile_max, mp128)
    if mp128 >= min_grid * 128 and _cdiv(m, t) < min_grid:
        t = _round_up(_cdiv(mp128, min_grid), 128)
    return t


def gabor_conv_pool(patches, w_bd, *, out_channels, tile_m):
    """patches: (36, Mpad) bf16; w_bd: (128, 36) bf16 -> (C, Mpad) bf16."""
    K4, Mpad = patches.shape
    R = w_bd.shape[0]                        # 128 = 4 offsets * 2 * C
    C = out_channels
    lane_chunk = 256 if tile_m % 256 == 0 else 128
    cost = pl.CostEstimate(
        flops=2 * R * K4 * Mpad + 16 * C * Mpad,
        transcendentals=C * Mpad,
        bytes_accessed=patches.size * 2 + w_bd.size * 2 + C * Mpad * 2)
    kernel = functools.partial(_gabor_pool_kernel, lane_chunk=lane_chunk)
    return pl.pallas_call(
        kernel,
        grid=(Mpad // tile_m,),
        in_specs=[pl.BlockSpec((K4, tile_m), lambda i: (0, i)),
                  pl.BlockSpec((R, K4), lambda i: (0, 0))],
        out_specs=pl.BlockSpec((C, tile_m), lambda i: (0, i)),
        out_shape=jax.ShapeDtypeStruct((C, Mpad), jnp.bfloat16),
        compiler_params=pltpu.CompilerParams(
            dimension_semantics=("parallel",)),
        cost_estimate=cost,
    )(patches, w_bd)


def conv_bias_relu_pool(patches, w_aug, *, tile_m):
    """patches: (4, K+1, Mpad) bf16 (last K row = ones);
    w_aug: (C, K+1) bf16 (last column = bias) -> (C, Mpad) f32."""
    _, K1, Mpad = patches.shape
    C = w_aug.shape[0]
    cost = pl.CostEstimate(
        flops=2 * 4 * C * K1 * Mpad + 5 * C * Mpad,
        transcendentals=0,
        bytes_accessed=patches.size * 2 + w_aug.size * 2 + C * Mpad * 4)
    return pl.pallas_call(
        _conv_pool_kernel,
        grid=(Mpad // tile_m,),
        in_specs=[pl.BlockSpec((4, K1, tile_m), lambda i: (0, 0, i)),
                  pl.BlockSpec((C, K1), lambda i: (0, 0))],
        out_specs=pl.BlockSpec((C, tile_m), lambda i: (0, i)),
        out_shape=jax.ShapeDtypeStruct((C, Mpad), jnp.float32),
        compiler_params=pltpu.CompilerParams(
            dimension_semantics=("parallel",)),
        cost_estimate=cost,
    )(patches, w_aug)


# ----------------------------- JAX glue ---------------------------------------

def build_gabor_kernels(kernel_para):
    """Replicates the torch kernel construction. Returns (16,1,3,3) re/im."""
    row_mat = jnp.array([[-1., -1., -1.], [0., 0., 0.], [1., 1., 1.]], jnp.float32)
    col_mat = jnp.array([[-1., 0., 1.], [-1., 0., 1.], [-1., 0., 1.]], jnp.float32)
    p0 = kernel_para[:, 0][:, None, None]                       # (16,1,1)
    p1 = kernel_para[:, 1][:, None, None]                       # (16,1,1)
    rotrow = row_mat[None] * jnp.cos(p0) + col_mat[None] * jnp.sin(p0)   # (16,3,3)
    rotcol = -row_mat[None] * jnp.sin(p0) + col_mat[None] * jnp.cos(p0)  # (16,3,3)
    kre_old = jnp.exp(-0.5 * (rotrow ** 2 / 1600.0 + rotcol ** 2 / 2500.0)) / (8 * PI)
    kim = kre_old * jnp.sin(2 * PI * p1 * rotrow)
    kre = kre_old * jnp.cos(2 * PI * p1 * rotrow)
    return kre[:, None, :, :], kim[:, None, :, :]


def conv_weight_to_lhs(w):
    """(O, Cin, kh, kw) -> (O, kh*kw*Cin): tap-major / channel-minor rows,
    matching the patch ordering of im2col_pooled_T."""
    O, C, kh, kw = w.shape
    return jnp.transpose(w, (0, 2, 3, 1)).reshape(O, kh * kw * C)


def _block_diag4(a):
    """Block-diagonal stack of 4 copies of `a` (r,c) -> (4r, 4c)."""
    r, c = a.shape
    out = jnp.zeros((4 * r, 4 * c), a.dtype)
    for o in range(4):
        out = out.at[o * r:(o + 1) * r, o * c:(o + 1) * c].set(a)
    return out


def im2col_pooled_T(x_nhwc, kh, kw, pad, m_pad):
    """'Transposed' im2col fused with 2x2-pool-window packing.

    Returns (4, kh*kw*C, m_pad): axis 0 = pooling-window offset dy*2+dx,
    axis 1 = conv patch (tap-major, channel-minor), axis 2 = flattened pooled
    output pixel n*Ho*Wo + ho*Wo + wo, zero-padded up to m_pad so the lane dim
    tiles cleanly in multiples of 128.
    """
    N, H, W, C = x_nhwc.shape
    Ho, Wo = H // 2, W // 2
    K = kh * kw * C
    xp = jnp.pad(x_nhwc, ((0, 0), (pad, pad), (pad, pad), (0, 0)))
    taps = [xp[:, ky:ky + H, kx:kx + W, :]
            for ky in range(kh) for kx in range(kw)]
    p = jnp.stack(taps, axis=3).reshape(N, H, W, K)            # (N,H,W,K)
    p = p.reshape(N, Ho, 2, Wo, 2, K)
    p = jnp.transpose(p, (2, 4, 5, 0, 1, 3)).reshape(4, K, N * Ho * Wo)
    m = N * Ho * Wo
    if m_pad > m:
        p = jnp.pad(p, ((0, 0), (0, 0), (0, m_pad - m)))
    return p


def cnngab_forward(x_nchw, params, *, tile_m1=512, tile_m2=512):
    N, _, H, W = x_nchw.shape                                   # (N,1,28,28)
    kre, kim = build_gabor_kernels(params["kernel_para"])       # (16,1,3,3)
    # Per-offset LHS: rows [0:16)=re, [16:32)=im.
    w_gab = jnp.concatenate(
        [conv_weight_to_lhs(kre), conv_weight_to_lhs(kim)], axis=0)     # (32,9)
    # Block-diagonal LHS: one (32,9) block per pool-window offset -> a single
    # MXU push per tile covers all 4 offsets (fills v5e's 128-row array).
    w_bd = _block_diag4(w_gab).astype(jnp.bfloat16)                     # (128,36)
    # Stage-2 LHS with the bias folded in as an extra K column (valid since
    # max_k(y_k + b) == max_k(y_k) + b).
    w2 = conv_weight_to_lhs(params["conv2_w"])                          # (32,400)
    w2_aug = jnp.concatenate(
        [w2, params["conv2_b"][:, None]], axis=1).astype(jnp.bfloat16)  # (32,401)

    x = jnp.transpose(x_nchw, (0, 2, 3, 1))                     # NHWC (N,28,28,1)

    # Stage 1: Gabor conv(3x3, pad 1) -> |.| -> ReLU -> maxpool 2x2 (fused).
    H1, W1 = H // 2, W // 2
    m1 = N * H1 * W1
    t1 = _choose_tile(m1, tile_m1)
    m1p = _round_up(m1, t1)
    p1 = im2col_pooled_T(x, 3, 3, 1, m1p).reshape(36, m1p).astype(jnp.bfloat16)
    y = gabor_conv_pool(p1, w_bd, out_channels=16, tile_m=t1)           # (16,m1p) bf16
    y = jnp.transpose(y[:, :m1].reshape(16, N, H1, W1), (1, 2, 3, 0))   # NHWC bf16

    # Stage 2: conv2(5x5, pad 2) + bias -> ReLU -> maxpool 2x2 (fused).
    H2, W2 = H1 // 2, W1 // 2
    m2 = N * H2 * W2
    t2 = _choose_tile(m2, tile_m2)
    m2p = _round_up(m2, t2)
    p2 = im2col_pooled_T(y, 5, 5, 2, m2p).astype(jnp.bfloat16)          # (4,400,m2p)
    ones = jnp.ones((4, 1, m2p), jnp.bfloat16)
    p2 = jnp.concatenate([p2, ones], axis=1)                            # (4,401,m2p)
    z = conv_bias_relu_pool(p2, w2_aug, tile_m=t2)                      # (32,m2p) f32

    # Flatten in PyTorch NCHW .view() order, then the linear head (XLA; a
    # 10-lane-wide pallas_call would be pure launch/masked-store overhead).
    z = jnp.transpose(z[:, :m2].reshape(32, N, H2 * W2), (1, 0, 2))
    z = z.reshape(N, 32 * H2 * W2)
    return z @ params["lin_w"].T + params["lin_b"][None]


def reference_forward(x_nchw, params):
    """Pure-JAX reference (lax.conv, f32) for correctness checking."""
    kre, kim = build_gabor_kernels(params["kernel_para"])
    dn = ("NCHW", "OIHW", "NCHW")
    y_re = jax.lax.conv_general_dilated(x_nchw, kre, (1, 1), ((1, 1), (1, 1)),
                                        dimension_numbers=dn)
    y_im = jax.lax.conv_general_dilated(x_nchw, kim, (1, 1), ((1, 1), (1, 1)),
                                        dimension_numbers=dn)
    y = jnp.maximum(jnp.sqrt(y_im ** 2 + y_re ** 2 + 1e-4) - 0.01, 0.0)
    N, C = y.shape[0], y.shape[1]
    y = y.reshape(N, C, 14, 2, 14, 2).max(axis=(3, 5))
    z = jax.lax.conv_general_dilated(y, params["conv2_w"], (1, 1), ((2, 2), (2, 2)),
                                     dimension_numbers=dn)
    z = jnp.maximum(z + params["conv2_b"][None, :, None, None], 0.0)
    z = z.reshape(N, 32, 7, 2, 7, 2).max(axis=(3, 5)).reshape(N, -1)
    return z @ params["lin_w"].T + params["lin_b"][None]


# ----------------------------- main -------------------------------------------

if __name__ == "__main__":
    key = jax.random.PRNGKey(0)
    kx, k1, k2, k3, k4, k5 = jax.random.split(key, 6)

    params = {
        "kernel_para": jax.random.normal(k1, (16, 2), jnp.float32),
        "conv2_w": jax.random.normal(k2, (32, 16, 5, 5), jnp.float32) * 0.05,
        "conv2_b": jax.random.normal(k3, (32,), jnp.float32) * 0.1,
        "lin_w": jax.random.normal(k4, (10, 32 * 7 * 7), jnp.float32) * 0.025,
        "lin_b": jax.random.normal(k5, (10,), jnp.float32) * 0.1,
    }

    # Forward implies single-channel 28x28 input (32*7*7 linear head); batch=2.
    x = jax.random.normal(kx, (2, 1, 28, 28), jnp.float32)

    out = jax.jit(cnngab_forward)(x, params)
    jax.block_until_ready(out)

    assert out.shape == (2, 10), out.shape
    ref = reference_forward(x, params)
    assert bool(jnp.allclose(out, ref, rtol=5e-2, atol=5e-2)), (
        "mismatch vs reference: max abs diff = %r" % float(jnp.max(jnp.abs(out - ref))))

    print("KERNEL_OK")
</pallas_src>

<mosaic_0001>
module attributes {stable_mosaic.version = 11 : i64} {
  func.func @_gabor_pool_kernel(%arg0: i32, %arg1: memref<36x256xbf16, #tpu.memory_space<vmem>>, %arg2: memref<128x36xbf16, #tpu.memory_space<vmem>>, %arg3: memref<16x256xbf16, #tpu.memory_space<vmem>>) attributes {dimension_semantics = [#tpu.dimension_semantics<parallel>], iteration_bounds = array<i64: 2>, scalar_prefetch = 0 : i64, scratch_operands = 0 : i64, tpu.core_type = #tpu.core_type<tc>, window_params = [{transform_indices = @transform_0, window_bounds = array<i64: 36, 256>}, {pipeline_mode = #tpu.pipeline_mode<synchronous>, transform_indices = @transform_1, window_bounds = array<i64: 128, 36>}, {transform_indices = @transform_2, window_bounds = array<i64: 16, 256>}]} {
    %c0 = arith.constant 0 : index
    %c0_0 = arith.constant 0 : index
    %0 = vector.load %arg2[%c0, %c0_0] : memref<128x36xbf16, #tpu.memory_space<vmem>>, vector<128x36xbf16>
    %c0_i32 = arith.constant 0 : i32
    %c256_i32 = arith.constant 256 : i32
    %1 = arith.muli %c0_i32, %c256_i32 : i32
    %2 = tpu.assume_multiple %1, 256 : i32
    %c0_1 = arith.constant 0 : index
    %3 = arith.index_cast %2 : i32 to index
    %4 = vector.load %arg1[%c0_1, %3] : memref<36x256xbf16, #tpu.memory_space<vmem>>, vector<36x256xbf16>
    %cst = arith.constant dense<0.000000e+00> : vector<128x256xf32>
    %5 = tpu.matmul %0, %4, %cst {dimension_numbers = #tpu.dot_dimension_numbers<[1], [0], [0], [1], [0, 0, 1, 1], [], []>} : vector<128x36xbf16>, vector<36x256xbf16>, vector<128x256xf32> -> vector<128x256xf32>
    %6 = vector.extract_strided_slice %5 {offsets = [0, 0], sizes = [16, 256], strides = [1, 1]} : vector<128x256xf32> to vector<16x256xf32>
    %7 = vector.extract_strided_slice %5 {offsets = [16, 0], sizes = [16, 256], strides = [1, 1]} : vector<128x256xf32> to vector<16x256xf32>
    %8 = arith.mulf %6, %6 : vector<16x256xf32>
    %9 = arith.mulf %7, %7 : vector<16x256xf32>
    %10 = arith.addf %8, %9 : vector<16x256xf32>
    %11 = vector.extract_strided_slice %5 {offsets = [32, 0], sizes = [16, 256], strides = [1, 1]} : vector<128x256xf32> to vector<16x256xf32>
    %12 = vector.extract_strided_slice %5 {offsets = [48, 0], sizes = [16, 256], strides = [1, 1]} : vector<128x256xf32> to vector<16x256xf32>
    %13 = arith.mulf %11, %11 : vector<16x256xf32>
    %14 = arith.mulf %12, %12 : vector<16x256xf32>
    %15 = arith.addf %13, %14 : vector<16x256xf32>
    %16 = arith.maximumf %10, %15 : vector<16x256xf32>
    %17 = vector.extract_strided_slice %5 {offsets = [64, 0], sizes = [16, 256], strides = [1, 1]} : vector<128x256xf32> to vector<16x256xf32>
    %18 = vector.extract_strided_slice %5 {offsets = [80, 0], sizes = [16, 256], strides = [1, 1]} : vector<128x256xf32> to vector<16x256xf32>
    %19 = arith.mulf %17, %17 : vector<16x256xf32>
    %20 = arith.mulf %18, %18 : vector<16x256xf32>
    %21 = arith.addf %19, %20 : vector<16x256xf32>
    %22 = arith.maximumf %16, %21 : vector<16x256xf32>
    %23 = vector.extract_strided_slice %5 {offsets = [96, 0], sizes = [16, 256], strides = [1, 1]} : vector<128x256xf32> to vector<16x256xf32>
    %24 = vector.extract_strided_slice %5 {offsets = [112, 0], sizes = [16, 256], strides = [1, 1]} : vector<128x256xf32> to vector<16x256xf32>
    %25 = arith.mulf %23, %23 : vector<16x256xf32>
    %26 = arith.mulf %24, %24 : vector<16x256xf32>
    %27 = arith.addf %25, %26 : vector<16x256xf32>
    %28 = arith.maximumf %22, %27 : vector<16x256xf32>
    %cst_2 = arith.constant 9.99999974E-5 : f32
    %29 = vector.broadcast %cst_2 : f32 to vector<16x256xf32>
    %30 = arith.addf %28, %29 : vector<16x256xf32>
    %31 = math.sqrt %30 : vector<16x256xf32>
    %cst_3 = arith.constant 0.00999999977 : f32
    %32 = vector.broadcast %cst_3 : f32 to vector<16x256xf32>
    %33 = arith.subf %31, %32 : vector<16x256xf32>
    %cst_4 = arith.constant 0.000000e+00 : f32
    %34 = vector.broadcast %cst_4 : f32 to vector<16x256xf32>
    %35 = arith.maximumf %33, %34 : vector<16x256xf32>
    %36 = arith.truncf %35 : vector<16x256xf32> to vector<16x256xbf16>
    %c0_5 = arith.constant 0 : index
    %37 = arith.index_cast %2 : i32 to index
    %38 = vector.load %arg3[%c0_5, %37] : memref<16x256xbf16, #tpu.memory_space<vmem>>, vector<16x256xbf16>
    tpu.vector_store %arg3[%c0_5, %37], %36 {strides = array<i32>} : memref<16x256xbf16, #tpu.memory_space<vmem>>, vector<16x256xbf16>,
    %c1_i32 = arith.constant 1 : i32
    return
  }
  func.func @transform_0(%arg0: i32) -> (i32, i32) {
    %c0_i32 = arith.constant 0 : i32
    %c0_i32_0 = arith.constant 0 : i32
    return %c0_i32, %arg0 : i32, i32
  }
  func.func @transform_1(%arg0: i32) -> (i32, i32) {
    %c0_i32 = arith.constant 0 : i32
    %c0_i32_0 = arith.constant 0 : i32
    %c0_i32_1 = arith.constant 0 : i32
    return %c0_i32, %c0_i32_0 : i32, i32
  }
  func.func @transform_2(%arg0: i32) -> (i32, i32) {
    %c0_i32 = arith.constant 0 : i32
    %c0_i32_0 = arith.constant 0 : i32
    return %c0_i32, %arg0 : i32, i32
  }
}

module attributes {stable_mosaic.version = 11 : i64} {
  func.func @_conv_pool_kernel(%arg0: i32, %arg1: memref<4x401x128xbf16, #tpu.memory_space<vmem>>, %arg2: memref<32x401xbf16, #tpu.memory_space<vmem>>, %arg3: memref<32x128xf32, #tpu.memory_space<vmem>>) attributes {dimension_semantics = [#tpu.dimension_semantics<parallel>], iteration_bounds = array<i64: 1>, scalar_prefetch = 0 : i64, scratch_operands = 0 : i64, tpu.core_type = #tpu.core_type<tc>, window_params = [{transform_indices = @transform_0, window_bounds = array<i64: 4, 401, 128>}, {pipeline_mode = #tpu.pipeline_mode<synchronous>, transform_indices = @transform_1, window_bounds = array<i64: 32, 401>}, {transform_indices = @transform_2, window_bounds = array<i64: 32, 128>}]} {
    %c0 = arith.constant 0 : index
    %c0_0 = arith.constant 0 : index
    %0 = vector.load %arg2[%c0, %c0_0] : memref<32x401xbf16, #tpu.memory_space<vmem>>, vector<32x401xbf16>
    %c0_1 = arith.constant 0 : index
    %c0_2 = arith.constant 0 : index
    %c0_3 = arith.constant 0 : index
    %1 = vector.load %arg1[%c0_1, %c0_2, %c0_3] : memref<4x401x128xbf16, #tpu.memory_space<vmem>>, vector<1x401x128xbf16>
    %2 = vector.shape_cast %1 : vector<1x401x128xbf16> to vector<401x128xbf16>
    %cst = arith.constant dense<0.000000e+00> : vector<32x128xf32>
    %3 = tpu.matmul %0, %2, %cst {dimension_numbers = #tpu.dot_dimension_numbers<[1], [0], [0], [1], [0, 0, 1, 1], [], []>} : vector<32x401xbf16>, vector<401x128xbf16>, vector<32x128xf32> -> vector<32x128xf32>
    %c1 = arith.constant 1 : index
    %c0_4 = arith.constant 0 : index
    %c0_5 = arith.constant 0 : index
    %4 = vector.load %arg1[%c1, %c0_4, %c0_5] : memref<4x401x128xbf16, #tpu.memory_space<vmem>>, vector<1x401x128xbf16>
    %5 = vector.shape_cast %4 : vector<1x401x128xbf16> to vector<401x128xbf16>
    %cst_6 = arith.constant dense<0.000000e+00> : vector<32x128xf32>
    %6 = tpu.matmul %0, %5, %cst_6 {dimension_numbers = #tpu.dot_dimension_numbers<[1], [0], [0], [1], [0, 0, 1, 1], [], []>} : vector<32x401xbf16>, vector<401x128xbf16>, vector<32x128xf32> -> vector<32x128xf32>
    %7 = arith.maximumf %3, %6 : vector<32x128xf32>
    %c2 = arith.constant 2 : index
    %c0_7 = arith.constant 0 : index
    %c0_8 = arith.constant 0 : index
    %8 = vector.load %arg1[%c2, %c0_7, %c0_8] : memref<4x401x128xbf16, #tpu.memory_space<vmem>>, vector<1x401x128xbf16>
    %9 = vector.shape_cast %8 : vector<1x401x128xbf16> to vector<401x128xbf16>
    %cst_9 = arith.constant dense<0.000000e+00> : vector<32x128xf32>
    %10 = tpu.matmul %0, %9, %cst_9 {dimension_numbers = #tpu.dot_dimension_numbers<[1], [0], [0], [1], [0, 0, 1, 1], [], []>} : vector<32x401xbf16>, vector<401x128xbf16>, vector<32x128xf32> -> vector<32x128xf32>
    %11 = arith.maximumf %7, %10 : vector<32x128xf32>
    %c3 = arith.constant 3 : index
    %c0_10 = arith.constant 0 : index
    %c0_11 = arith.constant 0 : index
    %12 = vector.load %arg1[%c3, %c0_10, %c0_11] : memref<4x401x128xbf16, #tpu.memory_space<vmem>>, vector<1x401x128xbf16>
    %13 = vector.shape_cast %12 : vector<1x401x128xbf16> to vector<401x128xbf16>
    %cst_12 = arith.constant dense<0.000000e+00> : vector<32x128xf32>
    %14 = tpu.matmul %0, %13, %cst_12 {dimension_numbers = #tpu.dot_dimension_numbers<[1], [0], [0], [1], [0, 0, 1, 1], [], []>} : vector<32x401xbf16>, vector<401x128xbf16>, vector<32x128xf32> -> vector<32x128xf32>
    %15 = arith.maximumf %11, %14 : vector<32x128xf32>
    %cst_13 = arith.constant 0.000000e+00 : f32
    %16 = vector.broadcast %cst_13 : f32 to vector<32x128xf32>
    %17 = arith.maximumf %15, %16 : vector<32x128xf32>
    %c0_14 = arith.constant 0 : index
    %c0_15 = arith.constant 0 : index
    %18 = vector.load %arg3[%c0_14, %c0_15] : memref<32x128xf32, #tpu.memory_space<vmem>>, vector<32x128xf32>
    tpu.vector_store %arg3[%c0_14, %c0_15], %17 {strides = array<i32>} : memref<32x128xf32, #tpu.memory_space<vmem>>, vector<32x128xf32>,
    return
  }
  func.func @transform_0(%arg0: i32) -> (i32, i32, i32) {
    %c0_i32 = arith.constant 0 : i32
    %c0_i32_0 = arith.constant 0 : i32
    %c0_i32_1 = arith.constant 0 : i32
    return %c0_i32, %c0_i32_0, %arg0 : i32, i32, i32
  }
  func.func @transform_1(%arg0: i32) -> (i32, i32) {
    %c0_i32 = arith.constant 0 : i32
    %c0_i32_0 = arith.constant 0 : i32
    %c0_i32_1 = arith.constant 0 : i32
    return %c0_i32, %c0_i32_0 : i32, i32
  }
  func.func @transform_2(%arg0: i32) -> (i32, i32) {
    %c0_i32 = arith.constant 0 : i32
    %c0_i32_0 = arith.constant 0 : i32
    return %c0_i32, %arg0 : i32, i32
  }
}

</mosaic_0001>

<llo_original>
// kernel: cnngab_forward.2
$region0: #{cnngab_forward.2}
  #allocation0 [shape = 'u32[]', space=smem, size = 0x4, offset = 0x4, fixed_abs, tag = 'smem constant byte address 0x4 - core index']
  #allocation1 [shape = 'u32[144,128]{1,0:T(1,128)}', space=vmem, size = 0x12000, scoped, tag = 'internal scratch']
  %s0 = inlined_call_operand.vmem [shape: bf16[36,512], index: 0, kind: input, shape index: {}]
  %s1 = inlined_call_operand.vmem [shape: bf16[128,36], index: 1, kind: input, shape index: {}]
  %s2 = inlined_call_operand.vmem [shape: bf16[16,512], index: 2, kind: output, shape index: {}]
  %s3 = sld [smem:[#allocation0]]
  $region113: #{cnngab_forward.2} parent=0
    _
  %s5 = ssub.s32 1, %s3
  %s6 = scalar_select 0, %s5, %s3
  $region1: #{cnngab_forward.2} parent=0
    #allocation2 [shape = 'u8[40960]{0}', space=vmem, size = 0xa000, scoped, tag = 'input window, operand 0']
    #allocation3 [shape = 'u8[16384]{0}', space=vmem, size = 0x4000, scoped, tag = 'output window, operand 0']
    loop: start=0, step=1, limit=4
    $region2: #{cnngab_forward.2} parent=1 // loop_pre_header
      _
    $region3: #{cnngab_forward.2} parent=1 // loop_header
      %s8 = sphi 0, %s12
      %p9 = scmp.ge.s32.totalorder %s8, 4
      %s18 = sphi 0, %s20
      %s21 = sphi 0, %s18
      %s22 = sphi 0, %s21
      %s38 = sphi 0, %s22
      %s42 = sphi 0, %s42
      %s44 = sphi 0, %s42
      %s45 = sphi 0, %s44
      %s59 = sphi 0, %s45
      %s65 = sphi 0, %s67
      %s68 = sphi 0, %s65
      %s69 = sphi 0, %s68
      %s85 = sphi 0, %s69
    $region4: #{cnngab_forward.2} parent=1 // loop_header_branch
      %11 = sbr.rel (%p9) target = $region8
    $region5: #{cnngab_forward.2} parent=1 // loop_body
      %s13 = ssub.s32 %s8, 1
      %s14 = ssub.s32 %s8, 2
      %s15 = sadd.s32 %s8, 1
      %s16 = ssub.s32 %s8, %s15
      %p17 = scmp.eq.s32.totalorder %s16, 0
      %s19 = sadd.s32 %s18, 1
      %s20 = scalar_select %p17, %s18, %s19
      %p23 = pneg %p17
      %p24 = scmp.eq.s32.totalorder %s8, 1
      %p25 = por %p23, %p24
      %p26 = scmp.ne.s32.totalorder %s18, %s21
      %p27 = scmp.eq.s32.totalorder %s8, 0
      %p28 = por %p26, %p27
      %p29 = scmp.ne.s32.totalorder %s18, %s21
      %p30 = scmp.eq.s32.totalorder %s13, 1
      %p31 = por %p29, %p30
      %p32 = scmp.ne.s32.totalorder %s21, %s22
      %p33 = scmp.eq.s32.totalorder %s13, 0
      %p34 = por %p32, %p33
      %p35 = scmp.ne.s32.totalorder %s21, %s22
      %p36 = scmp.eq.s32.totalorder %s14, 1
      %p37 = por %p35, %p36
      %p39 = scmp.ne.s32.totalorder %s22, %s38
      %p40 = scmp.eq.s32.totalorder %s14, 0
      %p41 = por %p39, %p40
      %s43 = sadd.s32 %s42, 1
      %p46 = scmp.eq.s32.totalorder %s8, 1
      %p47 = scmp.ne.s32.totalorder %s42, %s44
      %p48 = scmp.eq.s32.totalorder %s8, 0
      %p49 = por %p47, %p48
      %p50 = scmp.ne.s32.totalorder %s42, %s44
      %p51 = scmp.eq.s32.totalorder %s13, 1
      %p52 = por %p50, %p51
      %p53 = scmp.ne.s32.totalorder %s44, %s45
      %p54 = scmp.eq.s32.totalorder %s13, 0
      %p55 = por %p53, %p54
      %p56 = scmp.ne.s32.totalorder %s44, %s45
      %p57 = scmp.eq.s32.totalorder %s14, 1
      %p58 = por %p56, %p57
      %p60 = scmp.ne.s32.totalorder %s45, %s59
      %p61 = scmp.eq.s32.totalorder %s14, 0
      %p62 = por %p60, %p61
      %s63 = ssub.s32 %s8, %s15
      %p64 = scmp.eq.s32.totalorder %s63, 0
      %s66 = sadd.s32 %s65, 1
      %s67 = scalar_select %p64, %s65, %s66
      %p70 = pneg %p64
      %p71 = scmp.eq.s32.totalorder %s8, 1
      %p72 = por %p70, %p71
      %p73 = scmp.ne.s32.totalorder %s65, %s68
      %p74 = scmp.eq.s32.totalorder %s8, 0
      %p75 = por %p73, %p74
      %p76 = scmp.ne.s32.totalorder %s65, %s68
      %p77 = scmp.eq.s32.totalorder %s13, 1
      %p78 = por %p76, %p77
      %p79 = scmp.ne.s32.totalorder %s68, %s69
      %p80 = scmp.eq.s32.totalorder %s13, 0
      %p81 = por %p79, %p80
      %p82 = scmp.ne.s32.totalorder %s68, %s69
      %p83 = scmp.eq.s32.totalorder %s14, 1
      %p84 = por %p82, %p83
      %p86 = scmp.ne.s32.totalorder %s69, %s85
      %p87 = scmp.eq.s32.totalorder %s14, 0
      %p88 = por %p86, %p87
      %p89 = scmp.le.s32.totalorder 1, %s8
      %p90 = scmp.lt.s32.totalorder %s8, 3
      %p91 = pnand %p89, %p90
      %p92 = pneg %p91
      // Predicated region
      $region9: #{cnngab_forward.2} parent=5 // pred_check
        _
      $region10: #{cnngab_forward.2} parent=5 // pred_check_branch
        %94 = sbr.rel (%p91) target = $region12
      $region11: #{cnngab_forward.2} parent=5 // pred_region
        %s95 = ssub.s32 %s8, 1
        // Predicated region
        $region13: #{cnngab_forward.2} parent=11 // pred_check
          %p96 = pneg %p55
        $region14: #{cnngab_forward.2} parent=11 // pred_check_branch
          %98 = sbr.rel (%p96) target = $region16
        $region15: #{cnngab_forward.2} parent=11 // pred_region
          _
        $region16: #{cnngab_forward.2} parent=11 // pred_fallthru
          _
      $region12: #{cnngab_forward.2} parent=5 // pred_fallthru
        _
      %p99 = scmp.lt.s32.totalorder %s8, 2
      // Predicated region
      $region17: #{cnngab_forward.2} parent=5 // pred_check
        %p100 = pneg %p99
      $region18: #{cnngab_forward.2} parent=5 // pred_check_branch
        %102 = sbr.rel (%p100) target = $region20
      $region19: #{cnngab_forward.2} parent=5 // pred_region
        // Predicated region
        $region21: #{cnngab_forward.2} parent=19 // pred_check
          %p103 = pneg %p28
        $region22: #{cnngab_forward.2} parent=19 // pred_check_branch
          %105 = sbr.rel (%p103) target = $region24
        $region23: #{cnngab_forward.2} parent=19 // pred_region
          %s106 = sand.u32 %s18, 1
          %s107 = sand.u32 %s18, 1
          %s108 = smul.addr %s107, 40
          %s109 = scalar_lea.vmem [#allocation2], %s108
          %s110 = smul.u32 2, %s8
          %s111 = smul.addr %s110, 4
          %s112 = scalar_lea.vmem %s0, %s111
          // Predicated region
          $region25: #{cnngab_forward.2} parent=23 // pred_check
            _
          $region26: #{cnngab_forward.2} parent=23 // pred_check_branch
            %114 = sbr.rel (0) target = $region28
          $region27: #{cnngab_forward.2} parent=23 // pred_region
            // Predicated region
            $region29: #{cnngab_forward.2} parent=27 // pred_check
              _
            $region30: #{cnngab_forward.2} parent=27 // pred_check_branch
              %116 = sbr.rel (0) target = $region32
            $region31: #{cnngab_forward.2} parent=27 // pred_region
              // Predicated region
              $region44: #{cnngab_forward.2} parent=31 // pred_check
                _
              $region45: #{cnngab_forward.2} parent=31 // pred_check_branch
                %139 = sbr.rel (0) target = $region47
              $region46: #{cnngab_forward.2} parent=31 // pred_region
                loop: start=0, step=1, limit=1
                $region48: #{cnngab_forward.2} parent=46 // loop_pre_header
                  _
                $region49: #{cnngab_forward.2} parent=46 // loop_header
                  %s141 = sphi 0, %s145
                  %p142 = scmp.ge.s32.totalorder %s141, 1
                  %s146 = sphi %s112, %s112
                  %s147 = sphi %s109, %s109
                $region50: #{cnngab_forward.2} parent=46 // loop_header_branch
                  %144 = sbr.rel (%p142) target = $region54
                $region51: #{cnngab_forward.2} parent=46 // loop_body
                  %v148 = vld [vmem:[%s146] sm:$0xff]
                  %149 = vst [vmem:[%s147] sm:$0xff] %v148
                  %v150 = vld [vmem:[%s146 + $0x10] sm:$0xff]
                  %151 = vst [vmem:[%s147 + $0x8] sm:$0xff] %v150
                  %v152 = vld [vmem:[%s146 + $0x20] sm:$0xff]
                  %153 = vst [vmem:[%s147 + $0x10] sm:$0xff] %v152
                  %v154 = vld [vmem:[%s146 + $0x30] sm:$0xff]
                  %155 = vst [vmem:[%s147 + $0x18] sm:$0xff] %v154
                  %v156 = vld [vmem:[%s146 + $0x40] sm:$0xff]
                  %157 = vst [vmem:[%s147 + $0x20] sm:$0xff] %v156
                $region52: #{cnngab_forward.2} parent=46 // loop_footer
                  %s145 = sadd.s32 1, %s141
                $region53: #{cnngab_forward.2} parent=46 // loop_footer_branch
                  %140 = sbr.rel target = $region49
                $region54: #{cnngab_forward.2} parent=46 // loop_exit
                  _
              $region47: #{cnngab_forward.2} parent=31 // pred_fallthru
                _
              // Predicated region
              $region55: #{cnngab_forward.2} parent=31 // pred_check
                _
              $region56: #{cnngab_forward.2} parent=31 // pred_check_branch
                %159 = sbr.rel target = $region58
              $region57: #{cnngab_forward.2} parent=31 // pred_region
                _
              $region58: #{cnngab_forward.2} parent=31 // pred_fallthru
                _
            $region32: #{cnngab_forward.2} parent=27 // pred_fallthru
              _
            // Predicated region
            $region33: #{cnngab_forward.2} parent=27 // pred_check
              _
            $region34: #{cnngab_forward.2} parent=27 // pred_check_branch
              %118 = sbr.rel target = $region36
            $region35: #{cnngab_forward.2} parent=27 // pred_region
              loop: start=0, step=1, limit=1
              $region37: #{cnngab_forward.2} parent=35 // loop_pre_header
                _
              $region38: #{cnngab_forward.2} parent=35 // loop_header
                %s121 = sphi 0, %s125
                %p122 = scmp.ge.s32.totalorder %s121, 1
                %s126 = sphi %s112, %s112
                %s127 = sphi %s109, %s109
              $region39: #{cnngab_forward.2} parent=35 // loop_header_branch
                %124 = sbr.rel (%p122) target = $region43
              $region40: #{cnngab_forward.2} parent=35 // loop_body
                %v128 = vld [vmem:[%s126] sm:$0xff]
                %129 = vst [vmem:[%s127] sm:$0xff] %v128
                %v130 = vld [vmem:[%s126 + $0x10] sm:$0xff]
                %131 = vst [vmem:[%s127 + $0x8] sm:$0xff] %v130
                %v132 = vld [vmem:[%s126 + $0x20] sm:$0xff]
                %133 = vst [vmem:[%s127 + $0x10] sm:$0xff] %v132
                %v134 = vld [vmem:[%s126 + $0x30] sm:$0xff]
                %135 = vst [vmem:[%s127 + $0x18] sm:$0xff] %v134
                %v136 = vld [vmem:[%s126 + $0x40] sm:$0xff]
                %137 = vst [vmem:[%s127 + $0x20] sm:$0xff] %v136
              $region41: #{cnngab_forward.2} parent=35 // loop_footer
                %s125 = sadd.s32 1, %s121
              $region42: #{cnngab_forward.2} parent=35 // loop_footer_branch
                %120 = sbr.rel target = $region38
              $region43: #{cnngab_forward.2} parent=35 // loop_exit
                _
            $region36: #{cnngab_forward.2} parent=27 // pred_fallthru
              _
          $region28: #{cnngab_forward.2} parent=23 // pred_fallthru
            _
          %160 = vnop
        $region24: #{cnngab_forward.2} parent=19 // pred_fallthru
          _
      $region20: #{cnngab_forward.2} parent=5 // pred_fallthru
        _
      %p161 = scmp.le.s32.totalorder 1, %s8
      %p162 = scmp.lt.s32.totalorder %s8, 3
      %p163 = pnand %p161, %p162
      %p164 = pneg %p163
      // Predicated region
      $region59: #{cnngab_forward.2} parent=5 // pred_check
        _
      $region60: #{cnngab_forward.2} parent=5 // pred_check_branch
        %166 = sbr.rel (%p163) target = $region62
      $region61: #{cnngab_forward.2} parent=5 // pred_region
        %s167 = ssub.s32 %s8, 1
        %s168 = sand.u32 %s21, 1
        %s169 = sand.u32 %s21, 1
        %s170 = smul.addr %s169, 40
        %s171 = scalar_lea.vmem [#allocation2], %s170
        // Predicated region
        $region63: #{cnngab_forward.2} parent=61 // pred_check
          %p172 = pneg %p34
        $region64: #{cnngab_forward.2} parent=61 // pred_check_branch
          %174 = sbr.rel (%p172) target = $region66
        $region65: #{cnngab_forward.2} parent=61 // pred_region
          _
        $region66: #{cnngab_forward.2} parent=61 // pred_fallthru
          _
        %s175 = sand.u32 %s21, 1
        %s176 = sand.u32 %s21, 1
        %s177 = smul.addr %s176, 40
        %s178 = scalar_lea.vmem [#allocation2], %s177
        %p179 = pneg %p34
        %p180 = pneg %p31
        %p181 = pneg %p55
        %p182 = pneg %p52
        %p183 = pneg %p81
        %p184 = pneg %p78
        %s185 = sand.u32 %s68, 1
        %s186 = sand.u32 %s68, 1
        %s187 = smul.addr %s186, 16
        %s188 = scalar_lea.vmem [#allocation3], %s187
        %s189 = smul.u32 2, %s13
        %s190 = smul.u32 2, %s13
        %v192 = vld [vmem:[%s1] sm:$0xf]
        %v193 = vld [vmem:[%s1 + $0x4] sm:$0xf]
        %v194 = vld [vmem:[%s1 + $0x8] sm:$0xf]
        %v195 = vld [vmem:[%s1 + $0xc] sm:$0xf]
        %v196 = vld [vmem:[%s1 + $0x10] sm:$0xf]
        %v197 = vld [vmem:[%s1 + $0x14] sm:$0xf]
        %v198 = vld [vmem:[%s1 + $0x18] sm:$0xf]
        %v199 = vld [vmem:[%s1 + $0x1c] sm:$0xf]
        %v200 = vld [vmem:[%s1 + $0x20] sm:$0xf]
        %v201 = vld [vmem:[%s1 + $0x24] sm:$0xf]
        %v202 = vld [vmem:[%s1 + $0x28] sm:$0xf]
        %v203 = vld [vmem:[%s1 + $0x2c] sm:$0xf]
        %v204 = vld [vmem:[%s1 + $0x30] sm:$0xf]
        %v205 = vld [vmem:[%s1 + $0x34] sm:$0xf]
        %v206 = vld [vmem:[%s1 + $0x38] sm:$0xf]
        %v207 = vld [vmem:[%s1 + $0x3c] sm:$0xf]
        %v208 = vld [vmem:[%s171] sm:$0xff]
        %v209 = vld [vmem:[%s171 + $0x8] sm:$0xff]
        %v210 = vld [vmem:[%s171 + $0x10] sm:$0xff]
        %v211 = vld [vmem:[%s171 + $0x18] sm:$0xff]
        %v212 = vld [vmem:[%s171 + $0x20] sm:$0x33]
        %v229 = vunpack.c.l.b16 %v192
        %v230 = vunpack.c.l.b16 %v193
        %v231 = vunpack.c.l.b16 %v194
        %v232 = vunpack.c.l.b16 %v195
        %v233 = vunpack.c.l.b16 %v196
        %v234 = vunpack.c.l.b16 %v197
        %v235 = vunpack.c.l.b16 %v198
        %v236 = vunpack.c.l.b16 %v199
        %v237 = vunpack.c.l.b16 %v200
        %v238 = vunpack.c.l.b16 %v201
        %v239 = vunpack.c.l.b16 %v202
        %v240 = vunpack.c.l.b16 %v203
        %v241 = vunpack.c.l.b16 %v204
        %v242 = vunpack.c.l.b16 %v205
        %v243 = vunpack.c.l.b16 %v206
        %v244 = vunpack.c.l.b16 %v207
        %v245 = vpack.c.b16 %v230, %v229
        %v246 = vpack.c.b16 %v232, %v231
        %v247 = vpack.c.b16 %v234, %v233
        %v248 = vpack.c.b16 %v236, %v235
        %v249 = vpack.c.b16 %v238, %v237
        %v250 = vpack.c.b16 %v240, %v239
        %v251 = vpack.c.b16 %v242, %v241
        %v252 = vpack.c.b16 %v244, %v243
        %v258 = vunpack.c.l.b16 %v208
        %v259 = vunpack.c.h.b16 %v208
        %v260 = vunpack.c.l.b16 %v209
        %v261 = vunpack.c.h.b16 %v209
        %v262 = vunpack.c.l.b16 %v210
        %v263 = vunpack.c.h.b16 %v210
        %v264 = vunpack.c.l.b16 %v211
        %v265 = vunpack.c.h.b16 %v211
        %v266 = vunpack.c.l.b16 %v212
        %v267 = vunpack.c.h.b16 %v212
        %v268 = vpack.c.b16 %v260, %v258
        %v269 = vpack.c.b16 %v261, %v259
        %v270 = vpack.c.b16 %v264, %v262
        %v271 = vpack.c.b16 %v265, %v263
        %v272 = vpack.c.b16 %v266, %v266
        %v273 = vpack.c.b16 %v267, %v267
        %vm278 = vcmask 293888
        %v280 = vsel %vm278, %v245, 0
        %v283 = vsel %vm278, %v246, 0
        %v286 = vsel %vm278, %v247, 0
        %v289 = vsel %vm278, %v248, 0
        %v292 = vsel %vm278, %v249, 0
        %v295 = vsel %vm278, %v250, 0
        %v298 = vsel %vm278, %v251, 0
        %v301 = vsel %vm278, %v252, 0
        %vm303 = vcmask 1041408
        %v305 = vsel %vm303, %v272, 0
        %v308 = vsel %vm303, %v273, 0
        %310 = vmatprep.subr.bf16.mxu0 %v269
        %311 = vmatpush1.bf16.msra.mxu0 %v268
        %312 = vmatprep.subr.bf16.mxu0 %v271
        %313 = vmatpush1.bf16.msra.mxu0 %v270
        %314 = vmatprep.subr.bf16.mxu0 %v308
        %315 = vmatpush1.bf16.msra.mxu0 %v305
        %316 = vmatprep.subr.bf16.mxu0 0
        %317 = vmatpush1.bf16.msra.mxu0 0
        %318 = vmatprep.subr.bf16.mxu0 0
        %319 = vmatpush1.bf16.msra.mxu0 0
        %320 = vmatprep.subr.bf16.mxu0 0
        %321 = vmatpush1.bf16.msra.mxu0 0
        %322 = vmatprep.subr.bf16.mxu0 0
        %323 = vmatpush1.bf16.msra.mxu0 0
        %324 = vmatprep.subr.bf16.mxu0 0
        %325 = vmatpush1.bf16.msra.mxu0 0
        %326 = vmatprep.subr.bf16.mxu0 0
        %327 = vmatpush1.bf16.msra.mxu0 0
        %328 = vmatprep.subr.bf16.mxu0 0
        %329 = vmatpush1.bf16.msra.mxu0 0
        %330 = vmatprep.subr.bf16.mxu0 0
        %331 = vmatpush1.bf16.msra.mxu0 0
        %332 = vmatprep.subr.bf16.mxu0 0
        %333 = vmatpush1.bf16.msra.mxu0 0
        %334 = vmatprep.subr.bf16.mxu0 0
        %335 = vmatpush1.bf16.msra.mxu0 0
        %336 = vmatprep.subr.bf16.mxu0 0
        %337 = vmatpush1.bf16.msra.mxu0 0
        %338 = vmatprep.subr.bf16.mxu0 0
        %339 = vmatpush1.bf16.msra.mxu0 0
        %340 = vmatprep.subr.bf16.mxu0 0
        %341 = vmatpush1.bf16.msra.mxu0 0
        %342 = vmatprep.mubr.bf16.mxu0 0
        %343 = vmatmul.mubr.bf16.gmra.mrb[0].mxu0 %v280
        %v344 = vpop.f32.mrb[0].mxu0
        %v345 = vadd.f32 0.0, %v344
        %v346 = vpop.f32.mrb[0].mxu0
        %v347 = vadd.f32 0.0, %v346
        %v348 = vpop.f32.mrb[0].mxu0
        %v349 = vadd.f32 0.0, %v348
        %v350 = vpop.f32.mrb[0].mxu0
        %v351 = vadd.f32 0.0, %v350
        %352 = vmatprep.mubr.bf16.mxu0 0
        %353 = vmatmul.mubr.bf16.gmra.mrb[0].mxu0 %v283
        %v354 = vpop.f32.mrb[0].mxu0
        %v355 = vadd.f32 0.0, %v354
        %v356 = vpop.f32.mrb[0].mxu0
        %v357 = vadd.f32 0.0, %v356
        %v358 = vpop.f32.mrb[0].mxu0
        %v359 = vadd.f32 0.0, %v358
        %v360 = vpop.f32.mrb[0].mxu0
        %v361 = vadd.f32 0.0, %v360
        %362 = vmatprep.mubr.bf16.mxu0 0
        %363 = vmatmul.mubr.bf16.gmra.mrb[0].mxu0 %v286
        %v364 = vpop.f32.mrb[0].mxu0
        %v365 = vadd.f32 0.0, %v364
        %v366 = vpop.f32.mrb[0].mxu0
        %v367 = vadd.f32 0.0, %v366
        %v368 = vpop.f32.mrb[0].mxu0
        %v369 = vadd.f32 0.0, %v368
        %v370 = vpop.f32.mrb[0].mxu0
        %v371 = vadd.f32 0.0, %v370
        %372 = vmatprep.mubr.bf16.mxu0 0
        %373 = vmatmul.mubr.bf16.gmra.mrb[0].mxu0 %v289
        %v374 = vpop.f32.mrb[0].mxu0
        %v375 = vadd.f32 0.0, %v374
        %v376 = vpop.f32.mrb[0].mxu0
        %v377 = vadd.f32 0.0, %v376
        %v378 = vpop.f32.mrb[0].mxu0
        %v379 = vadd.f32 0.0, %v378
        %v380 = vpop.f32.mrb[0].mxu0
        %v381 = vadd.f32 0.0, %v380
        %382 = vmatprep.mubr.bf16.mxu0 0
        %383 = vmatmul.mubr.bf16.gmra.mrb[0].mxu0 %v292
        %v384 = vpop.f32.mrb[0].mxu0
        %v385 = vadd.f32 0.0, %v384
        %v386 = vpop.f32.mrb[0].mxu0
        %v387 = vadd.f32 0.0, %v386
        %v388 = vpop.f32.mrb[0].mxu0
        %v389 = vadd.f32 0.0, %v388
        %v390 = vpop.f32.mrb[0].mxu0
        %v391 = vadd.f32 0.0, %v390
        %392 = vmatprep.mubr.bf16.mxu0 0
        %393 = vmatmul.mubr.bf16.gmra.mrb[0].mxu0 %v295
        %v394 = vpop.f32.mrb[0].mxu0
        %v395 = vadd.f32 0.0, %v394
        %v396 = vpop.f32.mrb[0].mxu0
        %v397 = vadd.f32 0.0, %v396
        %v398 = vpop.f32.mrb[0].mxu0
        %v399 = vadd.f32 0.0, %v398
        %v400 = vpop.f32.mrb[0].mxu0
        %v401 = vadd.f32 0.0, %v400
        %402 = vmatprep.mubr.bf16.mxu0 0
        %403 = vmatmul.mubr.bf16.gmra.mrb[0].mxu0 %v298
        %v404 = vpop.f32.mrb[0].mxu0
        %v405 = vadd.f32 0.0, %v404
        %v406 = vpop.f32.mrb[0].mxu0
        %v407 = vadd.f32 0.0, %v406
        %v408 = vpop.f32.mrb[0].mxu0
        %v409 = vadd.f32 0.0, %v408
        %v410 = vpop.f32.mrb[0].mxu0
        %v411 = vadd.f32 0.0, %v410
        %412 = vmatprep.mubr.bf16.mxu0 0
        %413 = vmatmul.mubr.bf16.gmra.mrb[0].mxu0 %v301
        %v414 = vpop.f32.mrb[0].mxu0
        %v415 = vadd.f32 0.0, %v414
        %v416 = vpop.f32.mrb[0].mxu0
        %v417 = vadd.f32 0.0, %v416
        %v418 = vpop.f32.mrb[0].mxu0
        %v419 = vadd.f32 0.0, %v418
        %v420 = vpop.f32.mrb[0].mxu0
        %v421 = vadd.f32 0.0, %v420
        %422 = vdwg.mxu0
        %v423 = vmul.f32 %v345, %v345
        %v424 = vmul.f32 %v347, %v347
        %v425 = vmul.f32 %v349, %v349
        %v426 = vmul.f32 %v351, %v351
        %v427 = vmul.f32 %v355, %v355
        %v428 = vmul.f32 %v357, %v357
        %v429 = vmul.f32 %v359, %v359
        %v430 = vmul.f32 %v361, %v361
        %v431 = vadd.f32 %v423, %v427
        %v432 = vadd.f32 %v424, %v428
        %v433 = vadd.f32 %v425, %v429
        %v434 = vadd.f32 %v426, %v430
        %v435 = vmul.f32 %v365, %v365
        %v436 = vmul.f32 %v367, %v367
        %v437 = vmul.f32 %v369, %v369
        %v438 = vmul.f32 %v371, %v371
        %v439 = vmul.f32 %v375, %v375
        %v440 = vmul.f32 %v377, %v377
        %v441 = vmul.f32 %v379, %v379
        %v442 = vmul.f32 %v381, %v381
        %v443 = vadd.f32 %v435, %v439
        %v444 = vadd.f32 %v436, %v440
        %v445 = vadd.f32 %v437, %v441
        %v446 = vadd.f32 %v438, %v442
        %v447 = vmax.f32 %v431, %v443
        %v448 = vmax.f32 %v432, %v444
        %v449 = vmax.f32 %v433, %v445
        %v450 = vmax.f32 %v434, %v446
        %v451 = vmul.f32 %v385, %v385
        %v452 = vmul.f32 %v387, %v387
        %v453 = vmul.f32 %v389, %v389
        %v454 = vmul.f32 %v391, %v391
        %v455 = vmul.f32 %v395, %v395
        %v456 = vmul.f32 %v397, %v397
        %v457 = vmul.f32 %v399, %v399
        %v458 = vmul.f32 %v401, %v401
        %v459 = vadd.f32 %v451, %v455
        %v460 = vadd.f32 %v452, %v456
        %v461 = vadd.f32 %v453, %v457
        %v462 = vadd.f32 %v454, %v458
        %v463 = vmax.f32 %v447, %v459
        %v464 = vmax.f32 %v448, %v460
        %v465 = vmax.f32 %v449, %v461
        %v466 = vmax.f32 %v450, %v462
        %v467 = vmul.f32 %v405, %v405
        %v468 = vmul.f32 %v407, %v407
        %v469 = vmul.f32 %v409, %v409
        %v470 = vmul.f32 %v411, %v411
        %v471 = vmul.f32 %v415, %v415
        %v472 = vmul.f32 %v417, %v417
        %v473 = vmul.f32 %v419, %v419
        %v474 = vmul.f32 %v421, %v421
        %v475 = vadd.f32 %v467, %v471
        %v476 = vadd.f32 %v468, %v472
        %v477 = vadd.f32 %v469, %v473
        %v478 = vadd.f32 %v470, %v474
        %v479 = vmax.f32 %v463, %v475
        %v480 = vmax.f32 %v464, %v476
        %v481 = vmax.f32 %v465, %v477
        %v482 = vmax.f32 %v466, %v478
        %v483 = vadd.f32 %v479, 0.0001
        %v484 = vadd.f32 %v480, 0.0001
        %v485 = vadd.f32 %v481, 0.0001
        %v486 = vadd.f32 %v482, 0.0001
        %v487 = vrsqrt.pop %v483
        %v488 = vmul.f32 %v483, %v487
        %vm489 = vcmp.eq.f32.partialorder %v483, inf
        %v490 = vsel %vm489, %v483, %v488
        %vm491 = vcmp.eq.f32.partialorder %v483, 0.0
        %v492 = vand.u32 %v483, 2147483648
        %v493 = vsel %vm491, %v492, %v490
        %v494 = vrsqrt.pop %v484
        %v495 = vmul.f32 %v484, %v494
        %vm496 = vcmp.eq.f32.partialorder %v484, inf
        %v497 = vsel %vm496, %v484, %v495
        %vm498 = vcmp.eq.f32.partialorder %v484, 0.0
        %v499 = vand.u32 %v484, 2147483648
        %v500 = vsel %vm498, %v499, %v497
        %v501 = vrsqrt.pop %v485
        %v502 = vmul.f32 %v485, %v501
        %vm503 = vcmp.eq.f32.partialorder %v485, inf
        %v504 = vsel %vm503, %v485, %v502
        %vm505 = vcmp.eq.f32.partialorder %v485, 0.0
        %v506 = vand.u32 %v485, 2147483648
        %v507 = vsel %vm505, %v506, %v504
        %v508 = vrsqrt.pop %v486
        %v509 = vmul.f32 %v486, %v508
        %vm510 = vcmp.eq.f32.partialorder %v486, inf
        %v511 = vsel %vm510, %v486, %v509
        %vm512 = vcmp.eq.f32.partialorder %v486, 0.0
        %v513 = vand.u32 %v486, 2147483648
        %v514 = vsel %vm512, %v513, %v511
        %v515 = vsub.f32 %v493, 0.01
        %v516 = vsub.f32 %v500, 0.01
        %v517 = vsub.f32 %v507, 0.01
        %v518 = vsub.f32 %v514, 0.01
        %v519 = vmax.f32 %v515, 0.0
        %v520 = vmax.f32 %v516, 0.0
        %v521 = vmax.f32 %v517, 0.0
        %v522 = vmax.f32 %v518, 0.0
        %v523 = vpack.c.bf16 %v521, %v519
        %v524 = vpack.c.bf16 %v522, %v520
        %v527 = vunpack.c.l.b16 %v523
        %v528 = vunpack.c.l.b16 %v524
        %v529 = vunpack.c.h.b16 %v523
        %v530 = vunpack.c.h.b16 %v524
        %v531 = vpack.c.b16 %v528, %v527
        %v532 = vpack.c.b16 %v530, %v529
        %535 = vst [vmem:[%s188] sm:$0xff] %v531
        %536 = vst [vmem:[%s188 + $0x8] sm:$0xff] %v532
        %s537 = sand.u32 %s68, 1
        %s538 = sand.u32 %s68, 1
        %s539 = smul.addr %s538, 16
        %s540 = scalar_lea.vmem [#allocation3], %s539
        // Predicated region
        $region67: #{cnngab_forward.2} parent=61 // pred_check
          %p541 = pneg %p78
        $region68: #{cnngab_forward.2} parent=61 // pred_check_branch
          %543 = sbr.rel (%p541) target = $region70
        $region69: #{cnngab_forward.2} parent=61 // pred_region
          %s544 = smul.u32 2, %s13
          %s545 = smul.addr %s544, 4
          %s546 = scalar_lea.vmem %s2, %s545
          // Predicated region
          $region71: #{cnngab_forward.2} parent=69 // pred_check
            _
          $region72: #{cnngab_forward.2} parent=69 // pred_check_branch
            %548 = sbr.rel (0) target = $region74
          $region73: #{cnngab_forward.2} parent=69 // pred_region
            // Predicated region
            $region75: #{cnngab_forward.2} parent=73 // pred_check
              _
            $region76: #{cnngab_forward.2} parent=73 // pred_check_branch
              %550 = sbr.rel (0) target = $region78
            $region77: #{cnngab_forward.2} parent=73 // pred_region
              // Predicated region
              $region90: #{cnngab_forward.2} parent=77 // pred_check
                _
              $region91: #{cnngab_forward.2} parent=77 // pred_check_branch
                %567 = sbr.rel (0) target = $region93
              $region92: #{cnngab_forward.2} parent=77 // pred_region
                loop: start=0, step=1, limit=1
                $region94: #{cnngab_forward.2} parent=92 // loop_pre_header
                  _
                $region95: #{cnngab_forward.2} parent=92 // loop_header
                  %s569 = sphi 0, %s573
                  %p570 = scmp.ge.s32.totalorder %s569, 1
                  %s574 = sphi %s540, %s540
                  %s575 = sphi %s546, %s546
                $region96: #{cnngab_forward.2} parent=92 // loop_header_branch
                  %572 = sbr.rel (%p570) target = $region100
                $region97: #{cnngab_forward.2} parent=92 // loop_body
                  %v576 = vld [vmem:[%s574] sm:$0xff]
                  %577 = vst [vmem:[%s575] sm:$0xff] %v576
                  %v578 = vld [vmem:[%s574 + $0x8] sm:$0xff]
                  %579 = vst [vmem:[%s575 + $0x10] sm:$0xff] %v578
                $region98: #{cnngab_forward.2} parent=92 // loop_footer
                  %s573 = sadd.s32 1, %s569
                $region99: #{cnngab_forward.2} parent=92 // loop_footer_branch
                  %568 = sbr.rel target = $region95
                $region100: #{cnngab_forward.2} parent=92 // loop_exit
                  _
              $region93: #{cnngab_forward.2} parent=77 // pred_fallthru
                _
              // Predicated region
              $region101: #{cnngab_forward.2} parent=77 // pred_check
                _
              $region102: #{cnngab_forward.2} parent=77 // pred_check_branch
                %581 = sbr.rel target = $region104
              $region103: #{cnngab_forward.2} parent=77 // pred_region
                _
              $region104: #{cnngab_forward.2} parent=77 // pred_fallthru
                _
            $region78: #{cnngab_forward.2} parent=73 // pred_fallthru
              _
            // Predicated region
            $region79: #{cnngab_forward.2} parent=73 // pred_check
              _
            $region80: #{cnngab_forward.2} parent=73 // pred_check_branch
              %552 = sbr.rel target = $region82
            $region81: #{cnngab_forward.2} parent=73 // pred_region
              loop: start=0, step=1, limit=1
              $region83: #{cnngab_forward.2} parent=81 // loop_pre_header
                _
              $region84: #{cnngab_forward.2} parent=81 // loop_header
                %s555 = sphi 0, %s559
                %p556 = scmp.ge.s32.totalorder %s555, 1
                %s560 = sphi %s540, %s540
                %s561 = sphi %s546, %s546
              $region85: #{cnngab_forward.2} parent=81 // loop_header_branch
                %558 = sbr.rel (%p556) target = $region89
              $region86: #{cnngab_forward.2} parent=81 // loop_body
                %v562 = vld [vmem:[%s560] sm:$0xff]
                %563 = vst [vmem:[%s561] sm:$0xff] %v562
                %v564 = vld [vmem:[%s560 + $0x8] sm:$0xff]
                %565 = vst [vmem:[%s561 + $0x10] sm:$0xff] %v564
              $region87: #{cnngab_forward.2} parent=81 // loop_footer
                %s559 = sadd.s32 1, %s555
              $region88: #{cnngab_forward.2} parent=81 // loop_footer_branch
                %554 = sbr.rel target = $region84
              $region89: #{cnngab_forward.2} parent=81 // loop_exit
                _
            $region82: #{cnngab_forward.2} parent=73 // pred_fallthru
              _
          $region74: #{cnngab_forward.2} parent=69 // pred_fallthru
            _
          %582 = vnop
        $region70: #{cnngab_forward.2} parent=61 // pred_fallthru
          _
      $region62: #{cnngab_forward.2} parent=5 // pred_fallthru
        _
      %p583 = scmp.le.s32.totalorder 2, %s8
      // Predicated region
      $region105: #{cnngab_forward.2} parent=5 // pred_check
        %p584 = pneg %p583
      $region106: #{cnngab_forward.2} parent=5 // pred_check_branch
        %586 = sbr.rel (%p584) target = $region108
      $region107: #{cnngab_forward.2} parent=5 // pred_region
        %s587 = ssub.s32 %s8, 2
        // Predicated region
        $region109: #{cnngab_forward.2} parent=107 // pred_check
          %p588 = pneg %p84
        $region110: #{cnngab_forward.2} parent=107 // pred_check_branch
          %590 = sbr.rel (%p588) target = $region112
        $region111: #{cnngab_forward.2} parent=107 // pred_region
          %s591 = sand.u32 %s69, 1
          %s592 = sand.u32 %s69, 1
          %s593 = smul.addr %s592, 16
          %s594 = scalar_lea.vmem [#allocation3], %s593
        $region112: #{cnngab_forward.2} parent=107 // pred_fallthru
          _
      $region108: #{cnngab_forward.2} parent=5 // pred_fallthru
        _
    $region6: #{cnngab_forward.2} parent=1 // loop_footer
      %s12 = sadd.s32 1, %s8
    $region7: #{cnngab_forward.2} parent=1 // loop_footer_branch
      %7 = sbr.rel target = $region3
    $region8: #{cnngab_forward.2} parent=1 // loop_exit
      _

// kernel: cnngab_forward.3
$region0: #{cnngab_forward.3}
  #allocation0 [shape = 'u32[]', space=smem, size = 0x4, offset = 0x4, fixed_abs, tag = 'smem constant byte address 0x4 - core index']
  #allocation1 [shape = 'u32[144,128]{1,0:T(1,128)}', space=vmem, size = 0x12000, scoped, tag = 'internal scratch']
  %s0 = inlined_call_operand.vmem [shape: bf16[4,401,128], index: 0, kind: input, shape index: {}]
  %s1 = inlined_call_operand.vmem [shape: bf16[32,401], index: 1, kind: input, shape index: {}]
  %s2 = inlined_call_operand.vmem [shape: f32[32,128], index: 2, kind: output, shape index: {}]
  %s3 = sld [smem:[#allocation0]]
  $region18: #{cnngab_forward.3} parent=0
    _
  %s5 = ssub.s32 1, %s3
  %s6 = scalar_select 0, %s5, %s3
  // Predicated region
  $region2: #{cnngab_forward.3} parent=0 // pred_check
    _
  $region3: #{cnngab_forward.3} parent=0 // pred_check_branch
    %8 = sbr.rel (0) target = $region5
  $region4: #{cnngab_forward.3} parent=0 // pred_region
    _
  $region5: #{cnngab_forward.3} parent=0 // pred_fallthru
    _
  // Predicated region
  $region6: #{cnngab_forward.3} parent=0 // pred_check
    _
  $region7: #{cnngab_forward.3} parent=0 // pred_check_branch
    %10 = sbr.rel (0) target = $region9
  $region8: #{cnngab_forward.3} parent=0 // pred_region
    _
  $region9: #{cnngab_forward.3} parent=0 // pred_fallthru
    _
  %v12 = vld [vmem:[%s1] sm:$0xff]
  %v13 = vld [vmem:[%s1 + $0x8] sm:$0xff]
  %v14 = vld [vmem:[%s1 + $0x10] sm:$0xff]
  %v15 = vld [vmem:[%s1 + $0x18] sm:$0xff]
  %v16 = vld [vmem:[%s1 + $0x20] sm:$0xff]
  %v17 = vld [vmem:[%s1 + $0x28] sm:$0xff]
  %v18 = vld [vmem:[%s1 + $0x30] sm:$0xff]
  %v19 = vld [vmem:[%s1 + $0x38] sm:$0xff]
  %v20 = vld [vmem:[%s0] sm:$0xf]
  %v21 = vld [vmem:[%s0 + $0x4] sm:$0xf]
  %v22 = vld [vmem:[%s0 + $0x8] sm:$0xf]
  %v23 = vld [vmem:[%s0 + $0xc] sm:$0xf]
  %v24 = vld [vmem:[%s0 + $0x10] sm:$0xf]
  %v25 = vld [vmem:[%s0 + $0x14] sm:$0xf]
  %v26 = vld [vmem:[%s0 + $0x18] sm:$0xf]
  %v27 = vld [vmem:[%s0 + $0x1c] sm:$0xf]
  %v28 = vld [vmem:[%s0 + $0x20] sm:$0xf]
  %v29 = vld [vmem:[%s0 + $0x24] sm:$0xf]
  %v30 = vld [vmem:[%s0 + $0x28] sm:$0xf]
  %v31 = vld [vmem:[%s0 + $0x2c] sm:$0xf]
  %v32 = vld [vmem:[%s0 + $0x30] sm:$0xf]
  %v33 = vld [vmem:[%s0 + $0x34] sm:$0xf]
  %v34 = vld [vmem:[%s0 + $0x38] sm:$0xf]
  %v35 = vld [vmem:[%s0 + $0x3c] sm:$0xf]
  %v36 = vld [vmem:[%s0 + $0x40] sm:$0xf]
  %v37 = vld [vmem:[%s0 + $0x44] sm:$0xf]
  %v38 = vld [vmem:[%s0 + $0x48] sm:$0xf]
  %v39 = vld [vmem:[%s0 + $0x4c] sm:$0xf]
  %v40 = vld [vmem:[%s0 + $0x50] sm:$0xf]
  %v41 = vld [vmem:[%s0 + $0x54] sm:$0xf]
  %v42 = vld [vmem:[%s0 + $0x58] sm:$0xf]
  %v43 = vld [vmem:[%s0 + $0x5c] sm:$0xf]
  %v44 = vld [vmem:[%s0 + $0x60] sm:$0xf]
  %v45 = vld [vmem:[%s0 + $0x64] sm:$0xf]
  %v46 = vld [vmem:[%s0 + $0x68] sm:$0xf]
  %v47 = vld [vmem:[%s0 + $0x6c] sm:$0xf]
  %v48 = vld [vmem:[%s0 + $0x70] sm:$0xf]
  %v49 = vld [vmem:[%s0 + $0x74] sm:$0xf]
  %v50 = vld [vmem:[%s0 + $0x78] sm:$0xf]
  %v51 = vld [vmem:[%s0 + $0x7c] sm:$0xf]
  %v52 = vld [vmem:[%s0 + $0x80] sm:$0xf]
  %v53 = vld [vmem:[%s0 + $0x84] sm:$0xf]
  %v54 = vld [vmem:[%s0 + $0x88] sm:$0xf]
  %v55 = vld [vmem:[%s0 + $0x8c] sm:$0xf]
  %v56 = vld [vmem:[%s0 + $0x90] sm:$0xf]
  %v57 = vld [vmem:[%s0 + $0x94] sm:$0xf]
  %v58 = vld [vmem:[%s0 + $0x98] sm:$0xf]
  %v59 = vld [vmem:[%s0 + $0x9c] sm:$0xf]
  %v60 = vld [vmem:[%s0 + $0xa0] sm:$0xf]
  %v61 = vld [vmem:[%s0 + $0xa4] sm:$0xf]
  %v62 = vld [vmem:[%s0 + $0xa8] sm:$0xf]
  %v63 = vld [vmem:[%s0 + $0xac] sm:$0xf]
  %v64 = vld [vmem:[%s0 + $0xb0] sm:$0xf]
  %v65 = vld [vmem:[%s0 + $0xb4] sm:$0xf]
  %v66 = vld [vmem:[%s0 + $0xb8] sm:$0xf]
  %v67 = vld [vmem:[%s0 + $0xbc] sm:$0xf]
  %v68 = vld [vmem:[%s0 + $0xc0] sm:$0xf]
  %v69 = vld [vmem:[%s0 + $0xc4] sm:$0xf]
  %v70 = vld [vmem:[%s0 + $0xc8] sm:$0x1]
  %v79 = vunpack.c.l.b16 %v12
  %v80 = vunpack.c.h.b16 %v12
  %v81 = vunpack.c.l.b16 %v13
  %v82 = vunpack.c.h.b16 %v13
  %v83 = vunpack.c.l.b16 %v14
  %v84 = vunpack.c.h.b16 %v14
  %v85 = vunpack.c.l.b16 %v15
  %v86 = vunpack.c.h.b16 %v15
  %v87 = vunpack.c.l.b16 %v16
  %v88 = vunpack.c.h.b16 %v16
  %v89 = vunpack.c.l.b16 %v17
  %v90 = vunpack.c.h.b16 %v17
  %v91 = vunpack.c.l.b16 %v18
  %v92 = vunpack.c.h.b16 %v18
  %v93 = vunpack.c.l.b16 %v19
  %v94 = vunpack.c.h.b16 %v19
  %v95 = vpack.c.b16 %v83, %v79
  %v96 = vpack.c.b16 %v84, %v80
  %v97 = vpack.c.b16 %v85, %v81
  %v98 = vpack.c.b16 %v86, %v82
  %v99 = vpack.c.b16 %v91, %v87
  %v100 = vpack.c.b16 %v92, %v88
  %v101 = vpack.c.b16 %v93, %v89
  %v102 = vpack.c.b16 %v94, %v90
  %v160 = vunpack.c.l.b16 %v20
  %v161 = vunpack.c.l.b16 %v21
  %v162 = vunpack.c.l.b16 %v22
  %v163 = vunpack.c.l.b16 %v23
  %v164 = vunpack.c.l.b16 %v24
  %v165 = vunpack.c.l.b16 %v25
  %v166 = vunpack.c.l.b16 %v26
  %v167 = vunpack.c.l.b16 %v27
  %v168 = vunpack.c.l.b16 %v28
  %v169 = vunpack.c.l.b16 %v29
  %v170 = vunpack.c.l.b16 %v30
  %v171 = vunpack.c.l.b16 %v31
  %v172 = vunpack.c.l.b16 %v32
  %v173 = vunpack.c.l.b16 %v33
  %v174 = vunpack.c.l.b16 %v34
  %v175 = vunpack.c.l.b16 %v35
  %v176 = vunpack.c.l.b16 %v36
  %v177 = vunpack.c.l.b16 %v37
  %v178 = vunpack.c.l.b16 %v38
  %v179 = vunpack.c.l.b16 %v39
  %v180 = vunpack.c.l.b16 %v40
  %v181 = vunpack.c.l.b16 %v41
  %v182 = vunpack.c.l.b16 %v42
  %v183 = vunpack.c.l.b16 %v43
  %v184 = vunpack.c.l.b16 %v44
  %v185 = vunpack.c.l.b16 %v45
  %v186 = vunpack.c.l.b16 %v46
  %v187 = vunpack.c.l.b16 %v47
  %v188 = vunpack.c.l.b16 %v48
  %v189 = vunpack.c.l.b16 %v49
  %v190 = vunpack.c.l.b16 %v50
  %v191 = vunpack.c.l.b16 %v51
  %v192 = vunpack.c.l.b16 %v52
  %v193 = vunpack.c.l.b16 %v53
  %v194 = vunpack.c.l.b16 %v54
  %v195 = vunpack.c.l.b16 %v55
  %v196 = vunpack.c.l.b16 %v56
  %v197 = vunpack.c.l.b16 %v57
  %v198 = vunpack.c.l.b16 %v58
  %v199 = vunpack.c.l.b16 %v59
  %v200 = vunpack.c.l.b16 %v60
  %v201 = vunpack.c.l.b16 %v61
  %v202 = vunpack.c.l.b16 %v62
  %v203 = vunpack.c.l.b16 %v63
  %v204 = vunpack.c.l.b16 %v64
  %v205 = vunpack.c.l.b16 %v65
  %v206 = vunpack.c.l.b16 %v66
  %v207 = vunpack.c.l.b16 %v67
  %v208 = vunpack.c.l.b16 %v68
  %v209 = vunpack.c.l.b16 %v69
  %v210 = vunpack.c.l.b16 %v70
  %v211 = vpack.c.b16 %v161, %v160
  %v212 = vpack.c.b16 %v163, %v162
  %v213 = vpack.c.b16 %v165, %v164
  %v214 = vpack.c.b16 %v167, %v166
  %v215 = vpack.c.b16 %v169, %v168
  %v216 = vpack.c.b16 %v171, %v170
  %v217 = vpack.c.b16 %v173, %v172
  %v218 = vpack.c.b16 %v175, %v174
  %v219 = vpack.c.b16 %v177, %v176
  %v220 = vpack.c.b16 %v179, %v178
  %v221 = vpack.c.b16 %v181, %v180
  %v222 = vpack.c.b16 %v183, %v182
  %v223 = vpack.c.b16 %v185, %v184
  %v224 = vpack.c.b16 %v187, %v186
  %v225 = vpack.c.b16 %v189, %v188
  %v226 = vpack.c.b16 %v191, %v190
  %v227 = vpack.c.b16 %v193, %v192
  %v228 = vpack.c.b16 %v195, %v194
  %v229 = vpack.c.b16 %v197, %v196
  %v230 = vpack.c.b16 %v199, %v198
  %v231 = vpack.c.b16 %v201, %v200
  %v232 = vpack.c.b16 %v203, %v202
  %v233 = vpack.c.b16 %v205, %v204
  %v234 = vpack.c.b16 %v207, %v206
  %v235 = vpack.c.b16 %v209, %v208
  %v236 = vpack.c.b16 %v210, %v210
  %vm262 = vcmask 138240
  %v264 = vsel %vm262, %v98, 0
  %v267 = vsel %vm262, %v102, 0
  %vm269 = vcmask 1040384
  %v270 = vsel 0, 4294967295, 65535
  %v271 = vsel %vm269, %v270, 0
  %v273 = vand.u32 %v236, %v271
  %275 = vmatprep.subr.bf16.mxu0 0
  %276 = vmatpush1.bf16.msra.mxu0 %v211
  %277 = vmatprep.subr.bf16.mxu0 0
  %278 = vmatpush1.bf16.msra.mxu0 %v212
  %279 = vmatprep.subr.bf16.mxu0 0
  %280 = vmatpush1.bf16.msra.mxu0 %v213
  %281 = vmatprep.subr.bf16.mxu0 0
  %282 = vmatpush1.bf16.msra.mxu0 %v214
  %283 = vmatprep.subr.bf16.mxu0 0
  %284 = vmatpush1.bf16.msra.mxu0 %v215
  %285 = vmatprep.subr.bf16.mxu0 0
  %286 = vmatpush1.bf16.msra.mxu0 %v216
  %287 = vmatprep.subr.bf16.mxu0 0
  %288 = vmatpush1.bf16.msra.mxu0 %v217
  %289 = vmatprep.subr.bf16.mxu0 0
  %290 = vmatpush1.bf16.msra.mxu0 %v218
  %291 = vmatprep.subr.bf16.mxu0 0
  %292 = vmatpush1.bf16.msra.mxu0 %v219
  %293 = vmatprep.subr.bf16.mxu0 0
  %294 = vmatpush1.bf16.msra.mxu0 %v220
  %295 = vmatprep.subr.bf16.mxu0 0
  %296 = vmatpush1.bf16.msra.mxu0 %v221
  %297 = vmatprep.subr.bf16.mxu0 0
  %298 = vmatpush1.bf16.msra.mxu0 %v222
  %299 = vmatprep.subr.bf16.mxu0 0
  %300 = vmatpush1.bf16.msra.mxu0 %v223
  %301 = vmatprep.subr.bf16.mxu0 0
  %302 = vmatpush1.bf16.msra.mxu0 %v224
  %303 = vmatprep.subr.bf16.mxu0 0
  %304 = vmatpush1.bf16.msra.mxu0 %v225
  %305 = vmatprep.subr.bf16.mxu0 0
  %306 = vmatpush1.bf16.msra.mxu0 %v226
  %307 = vmatprep.mubr.bf16.mxu0 %v96
  %308 = vmatmul.mubr.bf16.gmra.mrb[0].mxu0 %v95
  %v309 = vpop.f32.mrb[0].mxu0
  %v310 = vadd.f32 0.0, %v309
  %v311 = vpop.f32.mrb[0].mxu0
  %v312 = vpop.f32.mrb[0].mxu0
  %v313 = vadd.f32 0.0, %v312
  %v314 = vpop.f32.mrb[0].mxu0
  %315 = vmatprep.mubr.bf16.mxu0 %v100
  %316 = vmatmul.mubr.bf16.gmra.mrb[0].mxu0 %v99
  %v317 = vpop.f32.mrb[0].mxu0
  %v318 = vadd.f32 0.0, %v317
  %v319 = vpop.f32.mrb[0].mxu0
  %v320 = vpop.f32.mrb[0].mxu0
  %v321 = vadd.f32 0.0, %v320
  %v322 = vpop.f32.mrb[0].mxu0
  %323 = vdwg.mxu0
  %324 = vmatprep.subr.bf16.mxu0 0
  %325 = vmatpush1.bf16.msra.mxu0 %v227
  %326 = vmatprep.subr.bf16.mxu0 0
  %327 = vmatpush1.bf16.msra.mxu0 %v228
  %328 = vmatprep.subr.bf16.mxu0 0
  %329 = vmatpush1.bf16.msra.mxu0 %v229
  %330 = vmatprep.subr.bf16.mxu0 0
  %331 = vmatpush1.bf16.msra.mxu0 %v230
  %332 = vmatprep.subr.bf16.mxu0 0
  %333 = vmatpush1.bf16.msra.mxu0 %v231
  %334 = vmatprep.subr.bf16.mxu0 0
  %335 = vmatpush1.bf16.msra.mxu0 %v232
  %336 = vmatprep.subr.bf16.mxu0 0
  %337 = vmatpush1.bf16.msra.mxu0 %v233
  %338 = vmatprep.subr.bf16.mxu0 0
  %339 = vmatpush1.bf16.msra.mxu0 %v234
  %340 = vmatprep.subr.bf16.mxu0 0
  %341 = vmatpush1.bf16.msra.mxu0 %v235
  %342 = vmatprep.subr.bf16.mxu0 0
  %343 = vmatpush1.bf16.msra.mxu0 %v273
  %344 = vmatprep.subr.bf16.mxu0 0
  %345 = vmatpush1.bf16.msra.mxu0 0
  %346 = vmatprep.subr.bf16.mxu0 0
  %347 = vmatpush1.bf16.msra.mxu0 0
  %348 = vmatprep.subr.bf16.mxu0 0
  %349 = vmatpush1.bf16.msra.mxu0 0
  %350 = vmatprep.subr.bf16.mxu0 0
  %351 = vmatpush1.bf16.msra.mxu0 0
  %352 = vmatprep.subr.bf16.mxu0 0
  %353 = vmatpush1.bf16.msra.mxu0 0
  %354 = vmatprep.subr.bf16.mxu0 0
  %355 = vmatpush1.bf16.msra.mxu0 0
  %356 = vmatprep.mubr.bf16.mxu0 %v264
  %357 = vmatmul.mubr.bf16.gmra.mrb[0].mxu0 %v97
  %v358 = vpop.f32.mrb[0].mxu0
  %v359 = vadd.f32 %v310, %v358
  %v360 = vpop.f32.mrb[0].mxu0
  %v361 = vpop.f32.mrb[0].mxu0
  %v362 = vadd.f32 %v313, %v361
  %v363 = vpop.f32.mrb[0].mxu0
  %364 = vmatprep.mubr.bf16.mxu0 %v267
  %365 = vmatmul.mubr.bf16.gmra.mrb[0].mxu0 %v101
  %v366 = vpop.f32.mrb[0].mxu0
  %v367 = vadd.f32 %v318, %v366
  %v368 = vpop.f32.mrb[0].mxu0
  %v369 = vpop.f32.mrb[0].mxu0
  %v370 = vadd.f32 %v321, %v369
  %v371 = vpop.f32.mrb[0].mxu0
  %372 = vdwg.mxu0
  %s373 = scalar_lea.vmem %s0, 204
  %v374 = vld [vmem:[%s373] sm:$0xf]
  %v375 = vld [vmem:[%s373 + $0x4] sm:$0xf]
  %v376 = vld [vmem:[%s373 + $0x8] sm:$0xf]
  %v377 = vld [vmem:[%s373 + $0xc] sm:$0xf]
  %v378 = vld [vmem:[%s373 + $0x10] sm:$0xf]
  %v379 = vld [vmem:[%s373 + $0x14] sm:$0xf]
  %v380 = vld [vmem:[%s373 + $0x18] sm:$0xf]
  %v381 = vld [vmem:[%s373 + $0x1c] sm:$0xf]
  %v382 = vld [vmem:[%s373 + $0x20] sm:$0xf]
  %v383 = vld [vmem:[%s373 + $0x24] sm:$0xf]
  %v384 = vld [vmem:[%s373 + $0x28] sm:$0xf]
  %v385 = vld [vmem:[%s373 + $0x2c] sm:$0xf]
  %v386 = vld [vmem:[%s373 + $0x30] sm:$0xf]
  %v387 = vld [vmem:[%s373 + $0x34] sm:$0xf]
  %v388 = vld [vmem:[%s373 + $0x38] sm:$0xf]
  %v389 = vld [vmem:[%s373 + $0x3c] sm:$0xf]
  %v390 = vld [vmem:[%s373 + $0x40] sm:$0xf]
  %v391 = vld [vmem:[%s373 + $0x44] sm:$0xf]
  %v392 = vld [vmem:[%s373 + $0x48] sm:$0xf]
  %v393 = vld [vmem:[%s373 + $0x4c] sm:$0xf]
  %v394 = vld [vmem:[%s373 + $0x50] sm:$0xf]
  %v395 = vld [vmem:[%s373 + $0x54] sm:$0xf]
  %v396 = vld [vmem:[%s373 + $0x58] sm:$0xf]
  %v397 = vld [vmem:[%s373 + $0x5c] sm:$0xf]
  %v398 = vld [vmem:[%s373 + $0x60] sm:$0xf]
  %v399 = vld [vmem:[%s373 + $0x64] sm:$0xf]
  %v400 = vld [vmem:[%s373 + $0x68] sm:$0xf]
  %v401 = vld [vmem:[%s373 + $0x6c] sm:$0xf]
  %v402 = vld [vmem:[%s373 + $0x70] sm:$0xf]
  %v403 = vld [vmem:[%s373 + $0x74] sm:$0xf]
  %v404 = vld [vmem:[%s373 + $0x78] sm:$0xf]
  %v405 = vld [vmem:[%s373 + $0x7c] sm:$0xf]
  %v406 = vld [vmem:[%s373 + $0x80] sm:$0xf]
  %v407 = vld [vmem:[%s373 + $0x84] sm:$0xf]
  %v408 = vld [vmem:[%s373 + $0x88] sm:$0xf]
  %v409 = vld [vmem:[%s373 + $0x8c] sm:$0xf]
  %v410 = vld [vmem:[%s373 + $0x90] sm:$0xf]
  %v411 = vld [vmem:[%s373 + $0x94] sm:$0xf]
  %v412 = vld [vmem:[%s373 + $0x98] sm:$0xf]
  %v413 = vld [vmem:[%s373 + $0x9c] sm:$0xf]
  %v414 = vld [vmem:[%s373 + $0xa0] sm:$0xf]
  %v415 = vld [vmem:[%s373 + $0xa4] sm:$0xf]
  %v416 = vld [vmem:[%s373 + $0xa8] sm:$0xf]
  %v417 = vld [vmem:[%s373 + $0xac] sm:$0xf]
  %v418 = vld [vmem:[%s373 + $0xb0] sm:$0xf]
  %v419 = vld [vmem:[%s373 + $0xb4] sm:$0xf]
  %v420 = vld [vmem:[%s373 + $0xb8] sm:$0xf]
  %v421 = vld [vmem:[%s373 + $0xbc] sm:$0xf]
  %v422 = vld [vmem:[%s373 + $0xc0] sm:$0xf]
  %v423 = vld [vmem:[%s373 + $0xc4] sm:$0xf]
  %v424 = vld [vmem:[%s373 + $0xc8] sm:$0x1]
  %v476 = vunpack.c.l.b16 %v374
  %v477 = vunpack.c.l.b16 %v375
  %v478 = vunpack.c.l.b16 %v376
  %v479 = vunpack.c.l.b16 %v377
  %v480 = vunpack.c.l.b16 %v378
  %v481 = vunpack.c.l.b16 %v379
  %v482 = vunpack.c.l.b16 %v380
  %v483 = vunpack.c.l.b16 %v381
  %v484 = vunpack.c.l.b16 %v382
  %v485 = vunpack.c.l.b16 %v383
  %v486 = vunpack.c.l.b16 %v384
  %v487 = vunpack.c.l.b16 %v385
  %v488 = vunpack.c.l.b16 %v386
  %v489 = vunpack.c.l.b16 %v387
  %v490 = vunpack.c.l.b16 %v388
  %v491 = vunpack.c.l.b16 %v389
  %v492 = vunpack.c.l.b16 %v390
  %v493 = vunpack.c.l.b16 %v391
  %v494 = vunpack.c.l.b16 %v392
  %v495 = vunpack.c.l.b16 %v393
  %v496 = vunpack.c.l.b16 %v394
  %v497 = vunpack.c.l.b16 %v395
  %v498 = vunpack.c.l.b16 %v396
  %v499 = vunpack.c.l.b16 %v397
  %v500 = vunpack.c.l.b16 %v398
  %v501 = vunpack.c.l.b16 %v399
  %v502 = vunpack.c.l.b16 %v400
  %v503 = vunpack.c.l.b16 %v401
  %v504 = vunpack.c.l.b16 %v402
  %v505 = vunpack.c.l.b16 %v403
  %v506 = vunpack.c.l.b16 %v404
  %v507 = vunpack.c.l.b16 %v405
  %v508 = vunpack.c.l.b16 %v406
  %v509 = vunpack.c.l.b16 %v407
  %v510 = vunpack.c.l.b16 %v408
  %v511 = vunpack.c.l.b16 %v409
  %v512 = vunpack.c.l.b16 %v410
  %v513 = vunpack.c.l.b16 %v411
  %v514 = vunpack.c.l.b16 %v412
  %v515 = vunpack.c.l.b16 %v413
  %v516 = vunpack.c.l.b16 %v414
  %v517 = vunpack.c.l.b16 %v415
  %v518 = vunpack.c.l.b16 %v416
  %v519 = vunpack.c.l.b16 %v417
  %v520 = vunpack.c.l.b16 %v418
  %v521 = vunpack.c.l.b16 %v419
  %v522 = vunpack.c.l.b16 %v420
  %v523 = vunpack.c.l.b16 %v421
  %v524 = vunpack.c.l.b16 %v422
  %v525 = vunpack.c.l.b16 %v423
  %v526 = vunpack.c.l.b16 %v424
  %v527 = vpack.c.b16 %v477, %v476
  %v528 = vpack.c.b16 %v479, %v478
  %v529 = vpack.c.b16 %v481, %v480
  %v530 = vpack.c.b16 %v483, %v482
  %v531 = vpack.c.b16 %v485, %v484
  %v532 = vpack.c.b16 %v487, %v486
  %v533 = vpack.c.b16 %v489, %v488
  %v534 = vpack.c.b16 %v491, %v490
  %v535 = vpack.c.b16 %v493, %v492
  %v536 = vpack.c.b16 %v495, %v494
  %v537 = vpack.c.b16 %v497, %v496
  %v538 = vpack.c.b16 %v499, %v498
  %v539 = vpack.c.b16 %v501, %v500
  %v540 = vpack.c.b16 %v503, %v502
  %v541 = vpack.c.b16 %v505, %v504
  %v542 = vpack.c.b16 %v507, %v506
  %v543 = vpack.c.b16 %v509, %v508
  %v544 = vpack.c.b16 %v511, %v510
  %v545 = vpack.c.b16 %v513, %v512
  %v546 = vpack.c.b16 %v515, %v514
  %v547 = vpack.c.b16 %v517, %v516
  %v548 = vpack.c.b16 %v519, %v518
  %v549 = vpack.c.b16 %v521, %v520
  %v550 = vpack.c.b16 %v523, %v522
  %v551 = vpack.c.b16 %v525, %v524
  %v552 = vpack.c.b16 %v526, %v526
  %v579 = vand.u32 %v552, %v271
  %581 = vmatprep.subr.bf16.mxu0 0
  %582 = vmatpush1.bf16.msra.mxu0 %v527
  %583 = vmatprep.subr.bf16.mxu0 0
  %584 = vmatpush1.bf16.msra.mxu0 %v528
  %585 = vmatprep.subr.bf16.mxu0 0
  %586 = vmatpush1.bf16.msra.mxu0 %v529
  %587 = vmatprep.subr.bf16.mxu0 0
  %588 = vmatpush1.bf16.msra.mxu0 %v530
  %589 = vmatprep.subr.bf16.mxu0 0
  %590 = vmatpush1.bf16.msra.mxu0 %v531
  %591 = vmatprep.subr.bf16.mxu0 0
  %592 = vmatpush1.bf16.msra.mxu0 %v532
  %593 = vmatprep.subr.bf16.mxu0 0
  %594 = vmatpush1.bf16.msra.mxu0 %v533
  %595 = vmatprep.subr.bf16.mxu0 0
  %596 = vmatpush1.bf16.msra.mxu0 %v534
  %597 = vmatprep.subr.bf16.mxu0 0
  %598 = vmatpush1.bf16.msra.mxu0 %v535
  %599 = vmatprep.subr.bf16.mxu0 0
  %600 = vmatpush1.bf16.msra.mxu0 %v536
  %601 = vmatprep.subr.bf16.mxu0 0
  %602 = vmatpush1.bf16.msra.mxu0 %v537
  %603 = vmatprep.subr.bf16.mxu0 0
  %604 = vmatpush1.bf16.msra.mxu0 %v538
  %605 = vmatprep.subr.bf16.mxu0 0
  %606 = vmatpush1.bf16.msra.mxu0 %v539
  %607 = vmatprep.subr.bf16.mxu0 0
  %608 = vmatpush1.bf16.msra.mxu0 %v540
  %609 = vmatprep.subr.bf16.mxu0 0
  %610 = vmatpush1.bf16.msra.mxu0 %v541
  %611 = vmatprep.subr.bf16.mxu0 0
  %612 = vmatpush1.bf16.msra.mxu0 %v542
  %613 = vmatprep.mubr.bf16.mxu0 %v96
  %614 = vmatmul.mubr.bf16.gmra.mrb[0].mxu0 %v95
  %v615 = vpop.f32.mrb[0].mxu0
  %v616 = vadd.f32 0.0, %v615
  %v617 = vpop.f32.mrb[0].mxu0
  %v618 = vpop.f32.mrb[0].mxu0
  %v619 = vadd.f32 0.0, %v618
  %v620 = vpop.f32.mrb[0].mxu0
  %621 = vmatprep.mubr.bf16.mxu0 %v100
  %622 = vmatmul.mubr.bf16.gmra.mrb[0].mxu0 %v99
  %v623 = vpop.f32.mrb[0].mxu0
  %v624 = vadd.f32 0.0, %v623
  %v625 = vpop.f32.mrb[0].mxu0
  %v626 = vpop.f32.mrb[0].mxu0
  %v627 = vadd.f32 0.0, %v626
  %v628 = vpop.f32.mrb[0].mxu0
  %629 = vdwg.mxu0
  %630 = vmatprep.subr.bf16.mxu0 0
  %631 = vmatpush1.bf16.msra.mxu0 %v543
  %632 = vmatprep.subr.bf16.mxu0 0
  %633 = vmatpush1.bf16.msra.mxu0 %v544
  %634 = vmatprep.subr.bf16.mxu0 0
  %635 = vmatpush1.bf16.msra.mxu0 %v545
  %636 = vmatprep.subr.bf16.mxu0 0
  %637 = vmatpush1.bf16.msra.mxu0 %v546
  %638 = vmatprep.subr.bf16.mxu0 0
  %639 = vmatpush1.bf16.msra.mxu0 %v547
  %640 = vmatprep.subr.bf16.mxu0 0
  %641 = vmatpush1.bf16.msra.mxu0 %v548
  %642 = vmatprep.subr.bf16.mxu0 0
  %643 = vmatpush1.bf16.msra.mxu0 %v549
  %644 = vmatprep.subr.bf16.mxu0 0
  %645 = vmatpush1.bf16.msra.mxu0 %v550
  %646 = vmatprep.subr.bf16.mxu0 0
  %647 = vmatpush1.bf16.msra.mxu0 %v551
  %648 = vmatprep.subr.bf16.mxu0 0
  %649 = vmatpush1.bf16.msra.mxu0 %v579
  %650 = vmatprep.subr.bf16.mxu0 0
  %651 = vmatpush1.bf16.msra.mxu0 0
  %652 = vmatprep.subr.bf16.mxu0 0
  %653 = vmatpush1.bf16.msra.mxu0 0
  %654 = vmatprep.subr.bf16.mxu0 0
  %655 = vmatpush1.bf16.msra.mxu0 0
  %656 = vmatprep.subr.bf16.mxu0 0
  %657 = vmatpush1.bf16.msra.mxu0 0
  %658 = vmatprep.subr.bf16.mxu0 0
  %659 = vmatpush1.bf16.msra.mxu0 0
  %660 = vmatprep.subr.bf16.mxu0 0
  %661 = vmatpush1.bf16.msra.mxu0 0
  %662 = vmatprep.mubr.bf16.mxu0 %v264
  %663 = vmatmul.mubr.bf16.gmra.mrb[0].mxu0 %v97
  %v664 = vpop.f32.mrb[0].mxu0
  %v665 = vadd.f32 %v616, %v664
  %v666 = vpop.f32.mrb[0].mxu0
  %v667 = vpop.f32.mrb[0].mxu0
  %v668 = vadd.f32 %v619, %v667
  %v669 = vpop.f32.mrb[0].mxu0
  %670 = vmatprep.mubr.bf16.mxu0 %v267
  %671 = vmatmul.mubr.bf16.gmra.mrb[0].mxu0 %v101
  %v672 = vpop.f32.mrb[0].mxu0
  %v673 = vadd.f32 %v624, %v672
  %v674 = vpop.f32.mrb[0].mxu0
  %v675 = vpop.f32.mrb[0].mxu0
  %v676 = vadd.f32 %v627, %v675
  %v677 = vpop.f32.mrb[0].mxu0
  %678 = vdwg.mxu0
  %v679 = vmax.f32 %v359, %v665
  %v680 = vmax.f32 %v362, %v668
  %v681 = vmax.f32 %v367, %v673
  %v682 = vmax.f32 %v370, %v676
  %s683 = scalar_lea.vmem %s0, 408
  %v684 = vld [vmem:[%s683] sm:$0xf]
  %v685 = vld [vmem:[%s683 + $0x4] sm:$0xf]
  %v686 = vld [vmem:[%s683 + $0x8] sm:$0xf]
  %v687 = vld [vmem:[%s683 + $0xc] sm:$0xf]
  %v688 = vld [vmem:[%s683 + $0x10] sm:$0xf]
  %v689 = vld [vmem:[%s683 + $0x14] sm:$0xf]
  %v690 = vld [vmem:[%s683 + $0x18] sm:$0xf]
  %v691 = vld [vmem:[%s683 + $0x1c] sm:$0xf]
  %v692 = vld [vmem:[%s683 + $0x20] sm:$0xf]
  %v693 = vld [vmem:[%s683 + $0x24] sm:$0xf]
  %v694 = vld [vmem:[%s683 + $0x28] sm:$0xf]
  %v695 = vld [vmem:[%s683 + $0x2c] sm:$0xf]
  %v696 = vld [vmem:[%s683 + $0x30] sm:$0xf]
  %v697 = vld [vmem:[%s683 + $0x34] sm:$0xf]
  %v698 = vld [vmem:[%s683 + $0x38] sm:$0xf]
  %v699 = vld [vmem:[%s683 + $0x3c] sm:$0xf]
  %v700 = vld [vmem:[%s683 + $0x40] sm:$0xf]
  %v701 = vld [vmem:[%s683 + $0x44] sm:$0xf]
  %v702 = vld [vmem:[%s683 + $0x48] sm:$0xf]
  %v703 = vld [vmem:[%s683 + $0x4c] sm:$0xf]
  %v704 = vld [vmem:[%s683 + $0x50] sm:$0xf]
  %v705 = vld [vmem:[%s683 + $0x54] sm:$0xf]
  %v706 = vld [vmem:[%s683 + $0x58] sm:$0xf]
  %v707 = vld [vmem:[%s683 + $0x5c] sm:$0xf]
  %v708 = vld [vmem:[%s683 + $0x60] sm:$0xf]
  %v709 = vld [vmem:[%s683 + $0x64] sm:$0xf]
  %v710 = vld [vmem:[%s683 + $0x68] sm:$0xf]
  %v711 = vld [vmem:[%s683 + $0x6c] sm:$0xf]
  %v712 = vld [vmem:[%s683 + $0x70] sm:$0xf]
  %v713 = vld [vmem:[%s683 + $0x74] sm:$0xf]
  %v714 = vld [vmem:[%s683 + $0x78] sm:$0xf]
  %v715 = vld [vmem:[%s683 + $0x7c] sm:$0xf]
  %v716 = vld [vmem:[%s683 + $0x80] sm:$0xf]
  %v717 = vld [vmem:[%s683 + $0x84] sm:$0xf]
  %v718 = vld [vmem:[%s683 + $0x88] sm:$0xf]
  %v719 = vld [vmem:[%s683 + $0x8c] sm:$0xf]
  %v720 = vld [vmem:[%s683 + $0x90] sm:$0xf]
  %v721 = vld [vmem:[%s683 + $0x94] sm:$0xf]
  %v722 = vld [vmem:[%s683 + $0x98] sm:$0xf]
  %v723 = vld [vmem:[%s683 + $0x9c] sm:$0xf]
  %v724 = vld [vmem:[%s683 + $0xa0] sm:$0xf]
  %v725 = vld [vmem:[%s683 + $0xa4] sm:$0xf]
  %v726 = vld [vmem:[%s683 + $0xa8] sm:$0xf]
  %v727 = vld [vmem:[%s683 + $0xac] sm:$0xf]
  %v728 = vld [vmem:[%s683 + $0xb0] sm:$0xf]
  %v729 = vld [vmem:[%s683 + $0xb4] sm:$0xf]
  %v730 = vld [vmem:[%s683 + $0xb8] sm:$0xf]
  %v731 = vld [vmem:[%s683 + $0xbc] sm:$0xf]
  %v732 = vld [vmem:[%s683 + $0xc0] sm:$0xf]
  %v733 = vld [vmem:[%s683 + $0xc4] sm:$0xf]
  %v734 = vld [vmem:[%s683 + $0xc8] sm:$0x1]
  %v786 = vunpack.c.l.b16 %v684
  %v787 = vunpack.c.l.b16 %v685
  %v788 = vunpack.c.l.b16 %v686
  %v789 = vunpack.c.l.b16 %v687
  %v790 = vunpack.c.l.b16 %v688
  %v791 = vunpack.c.l.b16 %v689
  %v792 = vunpack.c.l.b16 %v690
  %v793 = vunpack.c.l.b16 %v691
  %v794 = vunpack.c.l.b16 %v692
  %v795 = vunpack.c.l.b16 %v693
  %v796 = vunpack.c.l.b16 %v694
  %v797 = vunpack.c.l.b16 %v695
  %v798 = vunpack.c.l.b16 %v696
  %v799 = vunpack.c.l.b16 %v697
  %v800 = vunpack.c.l.b16 %v698
  %v801 = vunpack.c.l.b16 %v699
  %v802 = vunpack.c.l.b16 %v700
  %v803 = vunpack.c.l.b16 %v701
  %v804 = vunpack.c.l.b16 %v702
  %v805 = vunpack.c.l.b16 %v703
  %v806 = vunpack.c.l.b16 %v704
  %v807 = vunpack.c.l.b16 %v705
  %v808 = vunpack.c.l.b16 %v706
  %v809 = vunpack.c.l.b16 %v707
  %v810 = vunpack.c.l.b16 %v708
  %v811 = vunpack.c.l.b16 %v709
  %v812 = vunpack.c.l.b16 %v710
  %v813 = vunpack.c.l.b16 %v711
  %v814 = vunpack.c.l.b16 %v712
  %v815 = vunpack.c.l.b16 %v713
  %v816 = vunpack.c.l.b16 %v714
  %v817 = vunpack.c.l.b16 %v715
  %v818 = vunpack.c.l.b16 %v716
  %v819 = vunpack.c.l.b16 %v717
  %v820 = vunpack.c.l.b16 %v718
  %v821 = vunpack.c.l.b16 %v719
  %v822 = vunpack.c.l.b16 %v720
  %v823 = vunpack.c.l.b16 %v721
  %v824 = vunpack.c.l.b16 %v722
  %v825 = vunpack.c.l.b16 %v723
  %v826 = vunpack.c.l.b16 %v724
  %v827 = vunpack.c.l.b16 %v725
  %v828 = vunpack.c.l.b16 %v726
  %v829 = vunpack.c.l.b16 %v727
  %v830 = vunpack.c.l.b16 %v728
  %v831 = vunpack.c.l.b16 %v729
  %v832 = vunpack.c.l.b16 %v730
  %v833 = vunpack.c.l.b16 %v731
  %v834 = vunpack.c.l.b16 %v732
  %v835 = vunpack.c.l.b16 %v733
  %v836 = vunpack.c.l.b16 %v734
  %v837 = vpack.c.b16 %v787, %v786
  %v838 = vpack.c.b16 %v789, %v788
  %v839 = vpack.c.b16 %v791, %v790
  %v840 = vpack.c.b16 %v793, %v792
  %v841 = vpack.c.b16 %v795, %v794
  %v842 = vpack.c.b16 %v797, %v796
  %v843 = vpack.c.b16 %v799, %v798
  %v844 = vpack.c.b16 %v801, %v800
  %v845 = vpack.c.b16 %v803, %v802
  %v846 = vpack.c.b16 %v805, %v804
  %v847 = vpack.c.b16 %v807, %v806
  %v848 = vpack.c.b16 %v809, %v808
  %v849 = vpack.c.b16 %v811, %v810
  %v850 = vpack.c.b16 %v813, %v812
  %v851 = vpack.c.b16 %v815, %v814
  %v852 = vpack.c.b16 %v817, %v816
  %v853 = vpack.c.b16 %v819, %v818
  %v854 = vpack.c.b16 %v821, %v820
  %v855 = vpack.c.b16 %v823, %v822
  %v856 = vpack.c.b16 %v825, %v824
  %v857 = vpack.c.b16 %v827, %v826
  %v858 = vpack.c.b16 %v829, %v828
  %v859 = vpack.c.b16 %v831, %v830
  %v860 = vpack.c.b16 %v833, %v832
  %v861 = vpack.c.b16 %v835, %v834
  %v862 = vpack.c.b16 %v836, %v836
  %v889 = vand.u32 %v862, %v271
  %891 = vmatprep.subr.bf16.mxu0 0
  %892 = vmatpush1.bf16.msra.mxu0 %v837
  %893 = vmatprep.subr.bf16.mxu0 0
  %894 = vmatpush1.bf16.msra.mxu0 %v838
  %895 = vmatprep.subr.bf16.mxu0 0
  %896 = vmatpush1.bf16.msra.mxu0 %v839
  %897 = vmatprep.subr.bf16.mxu0 0
  %898 = vmatpush1.bf16.msra.mxu0 %v840
  %899 = vmatprep.subr.bf16.mxu0 0
  %900 = vmatpush1.bf16.msra.mxu0 %v841
  %901 = vmatprep.subr.bf16.mxu0 0
  %902 = vmatpush1.bf16.msra.mxu0 %v842
  %903 = vmatprep.subr.bf16.mxu0 0
  %904 = vmatpush1.bf16.msra.mxu0 %v843
  %905 = vmatprep.subr.bf16.mxu0 0
  %906 = vmatpush1.bf16.msra.mxu0 %v844
  %907 = vmatprep.subr.bf16.mxu0 0
  %908 = vmatpush1.bf16.msra.mxu0 %v845
  %909 = vmatprep.subr.bf16.mxu0 0
  %910 = vmatpush1.bf16.msra.mxu0 %v846
  %911 = vmatprep.subr.bf16.mxu0 0
  %912 = vmatpush1.bf16.msra.mxu0 %v847
  %913 = vmatprep.subr.bf16.mxu0 0
  %914 = vmatpush1.bf16.msra.mxu0 %v848
  %915 = vmatprep.subr.bf16.mxu0 0
  %916 = vmatpush1.bf16.msra.mxu0 %v849
  %917 = vmatprep.subr.bf16.mxu0 0
  %918 = vmatpush1.bf16.msra.mxu0 %v850
  %919 = vmatprep.subr.bf16.mxu0 0
  %920 = vmatpush1.bf16.msra.mxu0 %v851
  %921 = vmatprep.subr.bf16.mxu0 0
  %922 = vmatpush1.bf16.msra.mxu0 %v852
  %923 = vmatprep.mubr.bf16.mxu0 %v96
  %924 = vmatmul.mubr.bf16.gmra.mrb[0].mxu0 %v95
  %v925 = vpop.f32.mrb[0].mxu0
  %v926 = vadd.f32 0.0, %v925
  %v927 = vpop.f32.mrb[0].mxu0
  %v928 = vpop.f32.mrb[0].mxu0
  %v929 = vadd.f32 0.0, %v928
  %v930 = vpop.f32.mrb[0].mxu0
  %931 = vmatprep.mubr.bf16.mxu0 %v100
  %932 = vmatmul.mubr.bf16.gmra.mrb[0].mxu0 %v99
  %v933 = vpop.f32.mrb[0].mxu0
  %v934 = vadd.f32 0.0, %v933
  %v935 = vpop.f32.mrb[0].mxu0
  %v936 = vpop.f32.mrb[0].mxu0
  %v937 = vadd.f32 0.0, %v936
  %v938 = vpop.f32.mrb[0].mxu0
  %939 = vdwg.mxu0
  %940 = vmatprep.subr.bf16.mxu0 0
  %941 = vmatpush1.bf16.msra.mxu0 %v853
  %942 = vmatprep.subr.bf16.mxu0 0
  %943 = vmatpush1.bf16.msra.mxu0 %v854
  %944 = vmatprep.subr.bf16.mxu0 0
  %945 = vmatpush1.bf16.msra.mxu0 %v855
  %946 = vmatprep.subr.bf16.mxu0 0
  %947 = vmatpush1.bf16.msra.mxu0 %v856
  %948 = vmatprep.subr.bf16.mxu0 0
  %949 = vmatpush1.bf16.msra.mxu0 %v857
  %950 = vmatprep.subr.bf16.mxu0 0
  %951 = vmatpush1.bf16.msra.mxu0 %v858
  %952 = vmatprep.subr.bf16.mxu0 0
  %953 = vmatpush1.bf16.msra.mxu0 %v859
  %954 = vmatprep.subr.bf16.mxu0 0
  %955 = vmatpush1.bf16.msra.mxu0 %v860
  %956 = vmatprep.subr.bf16.mxu0 0
  %957 = vmatpush1.bf16.msra.mxu0 %v861
  %958 = vmatprep.subr.bf16.mxu0 0
  %959 = vmatpush1.bf16.msra.mxu0 %v889
  %960 = vmatprep.subr.bf16.mxu0 0
  %961 = vmatpush1.bf16.msra.mxu0 0
  %962 = vmatprep.subr.bf16.mxu0 0
  %963 = vmatpush1.bf16.msra.mxu0 0
  %964 = vmatprep.subr.bf16.mxu0 0
  %965 = vmatpush1.bf16.msra.mxu0 0
  %966 = vmatprep.subr.bf16.mxu0 0
  %967 = vmatpush1.bf16.msra.mxu0 0
  %968 = vmatprep.subr.bf16.mxu0 0
  %969 = vmatpush1.bf16.msra.mxu0 0
  %970 = vmatprep.subr.bf16.mxu0 0
  %971 = vmatpush1.bf16.msra.mxu0 0
  %972 = vmatprep.mubr.bf16.mxu0 %v264
  %973 = vmatmul.mubr.bf16.gmra.mrb[0].mxu0 %v97
  %v974 = vpop.f32.mrb[0].mxu0
  %v975 = vadd.f32 %v926, %v974
  %v976 = vpop.f32.mrb[0].mxu0
  %v977 = vpop.f32.mrb[0].mxu0
  %v978 = vadd.f32 %v929, %v977
  %v979 = vpop.f32.mrb[0].mxu0
  %980 = vmatprep.mubr.bf16.mxu0 %v267
  %981 = vmatmul.mubr.bf16.gmra.mrb[0].mxu0 %v101
  %v982 = vpop.f32.mrb[0].mxu0
  %v983 = vadd.f32 %v934, %v982
  %v984 = vpop.f32.mrb[0].mxu0
  %v985 = vpop.f32.mrb[0].mxu0
  %v986 = vadd.f32 %v937, %v985
  %v987 = vpop.f32.mrb[0].mxu0
  %988 = vdwg.mxu0
  %v989 = vmax.f32 %v679, %v975
  %v990 = vmax.f32 %v680, %v978
  %v991 = vmax.f32 %v681, %v983
  %v992 = vmax.f32 %v682, %v986
  %s993 = scalar_lea.vmem %s0, 612
  %v994 = vld [vmem:[%s993] sm:$0xf]
  %v995 = vld [vmem:[%s993 + $0x4] sm:$0xf]
  %v996 = vld [vmem:[%s993 + $0x8] sm:$0xf]
  %v997 = vld [vmem:[%s993 + $0xc] sm:$0xf]
  %v998 = vld [vmem:[%s993 + $0x10] sm:$0xf]
  %v999 = vld [vmem:[%s993 + $0x14] sm:$0xf]
  %v1000 = vld [vmem:[%s993 + $0x18] sm:$0xf]
  %v1001 = vld [vmem:[%s993 + $0x1c] sm:$0xf]
  %v1002 = vld [vmem:[%s993 + $0x20] sm:$0xf]
  %v1003 = vld [vmem:[%s993 + $0x24] sm:$0xf]
  %v1004 = vld [vmem:[%s993 + $0x28] sm:$0xf]
  %v1005 = vld [vmem:[%s993 + $0x2c] sm:$0xf]
  %v1006 = vld [vmem:[%s993 + $0x30] sm:$0xf]
  %v1007 = vld [vmem:[%s993 + $0x34] sm:$0xf]
  %v1008 = vld [vmem:[%s993 + $0x38] sm:$0xf]
  %v1009 = vld [vmem:[%s993 + $0x3c] sm:$0xf]
  %v1010 = vld [vmem:[%s993 + $0x40] sm:$0xf]
  %v1011 = vld [vmem:[%s993 + $0x44] sm:$0xf]
  %v1012 = vld [vmem:[%s993 + $0x48] sm:$0xf]
  %v1013 = vld [vmem:[%s993 + $0x4c] sm:$0xf]
  %v1014 = vld [vmem:[%s993 + $0x50] sm:$0xf]
  %v1015 = vld [vmem:[%s993 + $0x54] sm:$0xf]
  %v1016 = vld [vmem:[%s993 + $0x58] sm:$0xf]
  %v1017 = vld [vmem:[%s993 + $0x5c] sm:$0xf]
  %v1018 = vld [vmem:[%s993 + $0x60] sm:$0xf]
  %v1019 = vld [vmem:[%s993 + $0x64] sm:$0xf]
  %v1020 = vld [vmem:[%s993 + $0x68] sm:$0xf]
  %v1021 = vld [vmem:[%s993 + $0x6c] sm:$0xf]
  %v1022 = vld [vmem:[%s993 + $0x70] sm:$0xf]
  %v1023 = vld [vmem:[%s993 + $0x74] sm:$0xf]
  %v1024 = vld [vmem:[%s993 + $0x78] sm:$0xf]
  %v1025 = vld [vmem:[%s993 + $0x7c] sm:$0xf]
  %v1026 = vld [vmem:[%s993 + $0x80] sm:$0xf]
  %v1027 = vld [vmem:[%s993 + $0x84] sm:$0xf]
  %v1028 = vld [vmem:[%s993 + $0x88] sm:$0xf]
  %v1029 = vld [vmem:[%s993 + $0x8c] sm:$0xf]
  %v1030 = vld [vmem:[%s993 + $0x90] sm:$0xf]
  %v1031 = vld [vmem:[%s993 + $0x94] sm:$0xf]
  %v1032 = vld [vmem:[%s993 + $0x98] sm:$0xf]
  %v1033 = vld [vmem:[%s993 + $0x9c] sm:$0xf]
  %v1034 = vld [vmem:[%s993 + $0xa0] sm:$0xf]
  %v1035 = vld [vmem:[%s993 + $0xa4] sm:$0xf]
  %v1036 = vld [vmem:[%s993 + $0xa8] sm:$0xf]
  %v1037 = vld [vmem:[%s993 + $0xac] sm:$0xf]
  %v1038 = vld [vmem:[%s993 + $0xb0] sm:$0xf]
  %v1039 = vld [vmem:[%s993 + $0xb4] sm:$0xf]
  %v1040 = vld [vmem:[%s993 + $0xb8] sm:$0xf]
  %v1041 = vld [vmem:[%s993 + $0xbc] sm:$0xf]
  %v1042 = vld [vmem:[%s993 + $0xc0] sm:$0xf]
  %v1043 = vld [vmem:[%s993 + $0xc4] sm:$0xf]
  %v1044 = vld [vmem:[%s993 + $0xc8] sm:$0x1]
  %v1096 = vunpack.c.l.b16 %v994
  %v1097 = vunpack.c.l.b16 %v995
  %v1098 = vunpack.c.l.b16 %v996
  %v1099 = vunpack.c.l.b16 %v997
  %v1100 = vunpack.c.l.b16 %v998
  %v1101 = vunpack.c.l.b16 %v999
  %v1102 = vunpack.c.l.b16 %v1000
  %v1103 = vunpack.c.l.b16 %v1001
  %v1104 = vunpack.c.l.b16 %v1002
  %v1105 = vunpack.c.l.b16 %v1003
  %v1106 = vunpack.c.l.b16 %v1004
  %v1107 = vunpack.c.l.b16 %v1005
  %v1108 = vunpack.c.l.b16 %v1006
  %v1109 = vunpack.c.l.b16 %v1007
  %v1110 = vunpack.c.l.b16 %v1008
  %v1111 = vunpack.c.l.b16 %v1009
  %v1112 = vunpack.c.l.b16 %v1010
  %v1113 = vunpack.c.l.b16 %v1011
  %v1114 = vunpack.c.l.b16 %v1012
  %v1115 = vunpack.c.l.b16 %v1013
  %v1116 = vunpack.c.l.b16 %v1014
  %v1117 = vunpack.c.l.b16 %v1015
  %v1118 = vunpack.c.l.b16 %v1016
  %v1119 = vunpack.c.l.b16 %v1017
  %v1120 = vunpack.c.l.b16 %v1018
  %v1121 = vunpack.c.l.b16 %v1019
  %v1122 = vunpack.c.l.b16 %v1020
  %v1123 = vunpack.c.l.b16 %v1021
  %v1124 = vunpack.c.l.b16 %v1022
  %v1125 = vunpack.c.l.b16 %v1023
  %v1126 = vunpack.c.l.b16 %v1024
  %v1127 = vunpack.c.l.b16 %v1025
  %v1128 = vunpack.c.l.b16 %v1026
  %v1129 = vunpack.c.l.b16 %v1027
  %v1130 = vunpack.c.l.b16 %v1028
  %v1131 = vunpack.c.l.b16 %v1029
  %v1132 = vunpack.c.l.b16 %v1030
  %v1133 = vunpack.c.l.b16 %v1031
  %v1134 = vunpack.c.l.b16 %v1032
  %v1135 = vunpack.c.l.b16 %v1033
  %v1136 = vunpack.c.l.b16 %v1034
  %v1137 = vunpack.c.l.b16 %v1035
  %v1138 = vunpack.c.l.b16 %v1036
  %v1139 = vunpack.c.l.b16 %v1037
  %v1140 = vunpack.c.l.b16 %v1038
  %v1141 = vunpack.c.l.b16 %v1039
  %v1142 = vunpack.c.l.b16 %v1040
  %v1143 = vunpack.c.l.b16 %v1041
  %v1144 = vunpack.c.l.b16 %v1042
  %v1145 = vunpack.c.l.b16 %v1043
  %v1146 = vunpack.c.l.b16 %v1044
  %v1147 = vpack.c.b16 %v1097, %v1096
  %v1148 = vpack.c.b16 %v1099, %v1098
  %v1149 = vpack.c.b16 %v1101, %v1100
  %v1150 = vpack.c.b16 %v1103, %v1102
  %v1151 = vpack.c.b16 %v1105, %v1104
  %v1152 = vpack.c.b16 %v1107, %v1106
  %v1153 = vpack.c.b16 %v1109, %v1108
  %v1154 = vpack.c.b16 %v1111, %v1110
  %v1155 = vpack.c.b16 %v1113, %v1112
  %v1156 = vpack.c.b16 %v1115, %v1114
  %v1157 = vpack.c.b16 %v1117, %v1116
  %v1158 = vpack.c.b16 %v1119, %v1118
  %v1159 = vpack.c.b16 %v1121, %v1120
  %v1160 = vpack.c.b16 %v1123, %v1122
  %v1161 = vpack.c.b16 %v1125, %v1124
  %v1162 = vpack.c.b16 %v1127, %v1126
  %v1163 = vpack.c.b16 %v1129, %v1128
  %v1164 = vpack.c.b16 %v1131, %v1130
  %v1165 = vpack.c.b16 %v1133, %v1132
  %v1166 = vpack.c.b16 %v1135, %v1134
  %v1167 = vpack.c.b16 %v1137, %v1136
  %v1168 = vpack.c.b16 %v1139, %v1138
  %v1169 = vpack.c.b16 %v1141, %v1140
  %v1170 = vpack.c.b16 %v1143, %v1142
  %v1171 = vpack.c.b16 %v1145, %v1144
  %v1172 = vpack.c.b16 %v1146, %v1146
  %v1199 = vand.u32 %v1172, %v271
  %1201 = vmatprep.subr.bf16.mxu0 0
  %1202 = vmatpush1.bf16.msra.mxu0 %v1147
  %1203 = vmatprep.subr.bf16.mxu0 0
  %1204 = vmatpush1.bf16.msra.mxu0 %v1148
  %1205 = vmatprep.subr.bf16.mxu0 0
  %1206 = vmatpush1.bf16.msra.mxu0 %v1149
  %1207 = vmatprep.subr.bf16.mxu0 0
  %1208 = vmatpush1.bf16.msra.mxu0 %v1150
  %1209 = vmatprep.subr.bf16.mxu0 0
  %1210 = vmatpush1.bf16.msra.mxu0 %v1151
  %1211 = vmatprep.subr.bf16.mxu0 0
  %1212 = vmatpush1.bf16.msra.mxu0 %v1152
  %1213 = vmatprep.subr.bf16.mxu0 0
  %1214 = vmatpush1.bf16.msra.mxu0 %v1153
  %1215 = vmatprep.subr.bf16.mxu0 0
  %1216 = vmatpush1.bf16.msra.mxu0 %v1154
  %1217 = vmatprep.subr.bf16.mxu0 0
  %1218 = vmatpush1.bf16.msra.mxu0 %v1155
  %1219 = vmatprep.subr.bf16.mxu0 0
  %1220 = vmatpush1.bf16.msra.mxu0 %v1156
  %1221 = vmatprep.subr.bf16.mxu0 0
  %1222 = vmatpush1.bf16.msra.mxu0 %v1157
  %1223 = vmatprep.subr.bf16.mxu0 0
  %1224 = vmatpush1.bf16.msra.mxu0 %v1158
  %1225 = vmatprep.subr.bf16.mxu0 0
  %1226 = vmatpush1.bf16.msra.mxu0 %v1159
  %1227 = vmatprep.subr.bf16.mxu0 0
  %1228 = vmatpush1.bf16.msra.mxu0 %v1160
  %1229 = vmatprep.subr.bf16.mxu0 0
  %1230 = vmatpush1.bf16.msra.mxu0 %v1161
  %1231 = vmatprep.subr.bf16.mxu0 0
  %1232 = vmatpush1.bf16.msra.mxu0 %v1162
  %1233 = vmatprep.mubr.bf16.mxu0 %v96
  %1234 = vmatmul.mubr.bf16.gmra.mrb[0].mxu0 %v95
  %v1235 = vpop.f32.mrb[0].mxu0
  %v1236 = vadd.f32 0.0, %v1235
  %v1237 = vpop.f32.mrb[0].mxu0
  %v1238 = vpop.f32.mrb[0].mxu0
  %v1239 = vadd.f32 0.0, %v1238
  %v1240 = vpop.f32.mrb[0].mxu0
  %1241 = vmatprep.mubr.bf16.mxu0 %v100
  %1242 = vmatmul.mubr.bf16.gmra.mrb[0].mxu0 %v99
  %v1243 = vpop.f32.mrb[0].mxu0
  %v1244 = vadd.f32 0.0, %v1243
  %v1245 = vpop.f32.mrb[0].mxu0
  %v1246 = vpop.f32.mrb[0].mxu0
  %v1247 = vadd.f32 0.0, %v1246
  %v1248 = vpop.f32.mrb[0].mxu0
  %1249 = vdwg.mxu0
  %1250 = vmatprep.subr.bf16.mxu0 0
  %1251 = vmatpush1.bf16.msra.mxu0 %v1163
  %1252 = vmatprep.subr.bf16.mxu0 0
  %1253 = vmatpush1.bf16.msra.mxu0 %v1164
  %1254 = vmatprep.subr.bf16.mxu0 0
  %1255 = vmatpush1.bf16.msra.mxu0 %v1165
  %1256 = vmatprep.subr.bf16.mxu0 0
  %1257 = vmatpush1.bf16.msra.mxu0 %v1166
  %1258 = vmatprep.subr.bf16.mxu0 0
  %1259 = vmatpush1.bf16.msra.mxu0 %v1167
  %1260 = vmatprep.subr.bf16.mxu0 0
  %1261 = vmatpush1.bf16.msra.mxu0 %v1168
  %1262 = vmatprep.subr.bf16.mxu0 0
  %1263 = vmatpush1.bf16.msra.mxu0 %v1169
  %1264 = vmatprep.subr.bf16.mxu0 0
  %1265 = vmatpush1.bf16.msra.mxu0 %v1170
  %1266 = vmatprep.subr.bf16.mxu0 0
  %1267 = vmatpush1.bf16.msra.mxu0 %v1171
  %1268 = vmatprep.subr.bf16.mxu0 0
  %1269 = vmatpush1.bf16.msra.mxu0 %v1199
  %1270 = vmatprep.subr.bf16.mxu0 0
  %1271 = vmatpush1.bf16.msra.mxu0 0
  %1272 = vmatprep.subr.bf16.mxu0 0
  %1273 = vmatpush1.bf16.msra.mxu0 0
  %1274 = vmatprep.subr.bf16.mxu0 0
  %1275 = vmatpush1.bf16.msra.mxu0 0
  %1276 = vmatprep.subr.bf16.mxu0 0
  %1277 = vmatpush1.bf16.msra.mxu0 0
  %1278 = vmatprep.subr.bf16.mxu0 0
  %1279 = vmatpush1.bf16.msra.mxu0 0
  %1280 = vmatprep.subr.bf16.mxu0 0
  %1281 = vmatpush1.bf16.msra.mxu0 0
  %1282 = vmatprep.mubr.bf16.mxu0 %v264
  %1283 = vmatmul.mubr.bf16.gmra.mrb[0].mxu0 %v97
  %v1284 = vpop.f32.mrb[0].mxu0
  %v1285 = vadd.f32 %v1236, %v1284
  %v1286 = vpop.f32.mrb[0].mxu0
  %v1287 = vpop.f32.mrb[0].mxu0
  %v1288 = vadd.f32 %v1239, %v1287
  %v1289 = vpop.f32.mrb[0].mxu0
  %1290 = vmatprep.mubr.bf16.mxu0 %v267
  %1291 = vmatmul.mubr.bf16.gmra.mrb[0].mxu0 %v101
  %v1292 = vpop.f32.mrb[0].mxu0
  %v1293 = vadd.f32 %v1244, %v1292
  %v1294 = vpop.f32.mrb[0].mxu0
  %v1295 = vpop.f32.mrb[0].mxu0
  %v1296 = vadd.f32 %v1247, %v1295
  %v1297 = vpop.f32.mrb[0].mxu0
  %1298 = vdwg.mxu0
  %v1299 = vmax.f32 %v989, %v1285
  %v1300 = vmax.f32 %v990, %v1288
  %v1301 = vmax.f32 %v991, %v1293
  %v1302 = vmax.f32 %v992, %v1296
  %v1303 = vmax.f32 %v1299, 0.0
  %v1304 = vmax.f32 %v1300, 0.0
  %v1305 = vmax.f32 %v1301, 0.0
  %v1306 = vmax.f32 %v1302, 0.0
  %1307 = vst [vmem:[%s2] sm:$0xff] %v1303
  %1308 = vst [vmem:[%s2 + $0x8] sm:$0xff] %v1304
  %1309 = vst [vmem:[%s2 + $0x10] sm:$0xff] %v1305
  %1310 = vst [vmem:[%s2 + $0x18] sm:$0xff] %v1306
  // Predicated region
  $region10: #{cnngab_forward.3} parent=0 // pred_check
    _
  $region11: #{cnngab_forward.3} parent=0 // pred_check_branch
    %1312 = sbr.rel (0) target = $region13
  $region12: #{cnngab_forward.3} parent=0 // pred_region
    _
  $region13: #{cnngab_forward.3} parent=0 // pred_fallthru
    _
  // Predicated region
  $region14: #{cnngab_forward.3} parent=0 // pred_check
    _
  $region15: #{cnngab_forward.3} parent=0 // pred_check_branch
    %1314 = sbr.rel (0) target = $region17
  $region16: #{cnngab_forward.3} parent=0 // pred_region
    _
  $region17: #{cnngab_forward.3} parent=0 // pred_fallthru
    _

</llo_original>
